<compile_context>
chip_gen: v7x
topology: tpu7x:2x2x1
jax: 0.10.0
libtpu: 0.0.40
codegen_flags: <defaults>
</compile_context>

<pallas_src>
import math
import jax
import jax.numpy as jnp
from jax.experimental import pallas as pl
from jax.experimental.pallas import tpu as pltpu


# ----------------------------- fused model kernel -----------------------------
def make_fused_lstm_kernel(num_layers, T, H, Bp):
    """Builds the fused LSTM+FC kernel for fixed (num_layers, T, H, padded batch)."""

    def kernel(*refs):
        x_ref = refs[0]                                   # (T*Bp, D) time-major, flat
        layer_refs = refs[1:1 + 3 * num_layers]           # (W_ih^T, W_hh^T, bias) per layer
        fcw_ref = refs[1 + 3 * num_layers]                # (1, H)
        fcb_ref = refs[2 + 3 * num_layers]                # (1, 1)
        out_ref = refs[3 + 3 * num_layers]                # (Bp, 1)

        # Lane mask selecting the g-gate columns of the (Bp, 4H) gate tensor.
        # Hoisted out of all loops (broadcasts are not CSE'd by JAX).
        lane = jax.lax.broadcasted_iota(jnp.int32, (Bp, 4 * H), 1)
        g_lane = (lane >= 2 * H) & (lane < 3 * H)

        x_flat = x_ref[...]                               # current layer's input, (T*Bp, Din)

        h = None
        for layer in range(num_layers):
            w_ih = layer_refs[3 * layer][...]              # (Din, 4H), g-cols pre-scaled x2
            w_hh = layer_refs[3 * layer + 1][...]          # (H,   4H), g-cols pre-scaled x2
            b = layer_refs[3 * layer + 2][...]             # (1,   4H), g-cols pre-scaled x2
            last_layer = layer == num_layers - 1

            # Batched input projection for all T timesteps: one MXU matmul per layer with
            # the bias folded in. Only the K=H recurrent matmul stays in the serial loop.
            xproj = jnp.dot(x_flat, w_ih,
                            preferred_element_type=jnp.float32) + b       # (T*Bp, 4H)

            h = jnp.zeros((Bp, H), jnp.float32)
            c = jnp.zeros((Bp, H), jnp.float32)
            outs = []
            for t in range(T):
                # Aligned leading-axis (sublane-group) slice of the precomputed projection.
                gates = xproj[t * Bp:(t + 1) * Bp, :] + jnp.dot(
                    h, w_hh, preferred_element_type=jnp.float32)          # (Bp, 4H)
                # ONE full-width EUP pass: tanh(z) = 2*sigmoid(2z) - 1, with the x2 folded
                # into the g-gate weight/bias columns at init. 2*s - 1 is a free VPU op.
                s = jax.nn.sigmoid(gates)
                act = jnp.where(g_lane, 2.0 * s - 1.0, s)
                i_g = act[:, 0 * H:1 * H]
                f_g = act[:, 1 * H:2 * H]
                g_g = act[:, 2 * H:3 * H]
                o_g = act[:, 3 * H:4 * H]
                c = f_g * c + i_g * g_g
                h = o_g * jnp.tanh(c)
                if not last_layer:
                    outs.append(h)                         # stays in VMEM/vregs
            if not last_layer:
                # Inter-layer dropout: identity in eval()/inference (matches PyTorch).
                # Time-major stack so next layer's xproj slicing stays row-aligned.
                x_flat = jnp.concatenate(outs, axis=0)     # (T*Bp, H)

        # Dropout(eval) = identity. FC head as a VPU multiply + lane reduce
        # (avoids a wasteful N=1 MXU matmul and an extra kernel launch).
        out = jnp.sum(h * fcw_ref[...], axis=1, keepdims=True) + fcb_ref[...]   # (Bp, 1)
        out_ref[...] = out.astype(out_ref.dtype)

    return kernel


# ----------------------------- wrapper -----------------------------
def lstm_model_forward(x_btd, lstm_params, fc_w, fc_b):
    """x_btd: (B, T, D) batch_first like PyTorch. lstm_params: list of
    (w_ih, w_hh, b_ih, b_hh) in PyTorch layout. Returns (B, 1)."""
    B, T, D = x_btd.shape
    H = fc_w.shape[1]
    num_layers = len(lstm_params)
    Bp = max(8, -(-B // 8) * 8)                     # pad batch to a full sublane group

    # Wrapper-side layout plumbing (free): pad batch, go time-major, flatten.
    x_pad = jnp.pad(x_btd.astype(jnp.float32), ((0, Bp - B), (0, 0), (0, 0)))
    x_flat = jnp.transpose(x_pad, (1, 0, 2)).reshape(T * Bp, D)

    # PyTorch layout -> kernel layout: W^T per matmul, fused bias, and x2 on the g-gate
    # columns so the kernel needs a single sigmoid pass (tanh(z) = 2*sigmoid(2z) - 1).
    g_scale = jnp.ones((4 * H,), jnp.float32).at[2 * H:3 * H].set(2.0)
    flat_params = []
    for (w_ih, w_hh, b_ih, b_hh) in lstm_params:
        flat_params.append(w_ih.T * g_scale)                          # (Din, 4H)
        flat_params.append(w_hh.T * g_scale)                          # (H,   4H)
        flat_params.append(((b_ih + b_hh) * g_scale)[None, :])        # (1,   4H)

    n_inputs = 1 + len(flat_params) + 2
    kernel = make_fused_lstm_kernel(num_layers, T, H, Bp)
    out = pl.pallas_call(
        kernel,
        out_shape=jax.ShapeDtypeStruct((Bp, 1), jnp.float32),
        in_specs=[pl.BlockSpec(memory_space=pltpu.MemorySpace.VMEM)] * n_inputs,
        out_specs=pl.BlockSpec(memory_space=pltpu.MemorySpace.VMEM),
    )(x_flat, *flat_params, fc_w, fc_b.reshape(1, 1))
    return out[:B]


# ----------------------------- param init (deterministic, PyTorch layout) ---------------
def init_params(key, input_size, hidden_size, num_layers):
    k = 1.0 / math.sqrt(hidden_size)                 # PyTorch default U(-k, k)
    keys = jax.random.split(key, num_layers * 4 + 2)
    ki = 0
    lstm_params = []
    for layer in range(num_layers):
        d_in = input_size if layer == 0 else hidden_size
        w_ih = jax.random.uniform(keys[ki], (4 * hidden_size, d_in), jnp.float32, -k, k); ki += 1
        w_hh = jax.random.uniform(keys[ki], (4 * hidden_size, hidden_size), jnp.float32, -k, k); ki += 1
        b_ih = jax.random.uniform(keys[ki], (4 * hidden_size,), jnp.float32, -k, k); ki += 1
        b_hh = jax.random.uniform(keys[ki], (4 * hidden_size,), jnp.float32, -k, k); ki += 1
        lstm_params.append((w_ih, w_hh, b_ih, b_hh))
    fc_w = jax.random.uniform(keys[ki], (1, hidden_size), jnp.float32, -k, k); ki += 1
    fc_b = jax.random.uniform(keys[ki], (1,), jnp.float32, -k, k)
    return lstm_params, fc_w, fc_b


# ----------------------------- pure-JAX reference -----------------------------
def reference_forward(x_btd, lstm_params, fc_w, fc_b):
    B, T, _ = x_btd.shape
    x = x_btd
    for (w_ih, w_hh, b_ih, b_hh) in lstm_params:
        H = w_hh.shape[1]
        h = jnp.zeros((B, H), jnp.float32)
        c = jnp.zeros((B, H), jnp.float32)
        outs = []
        for t in range(T):
            gates = x[:, t, :] @ w_ih.T + h @ w_hh.T + b_ih + b_hh
            i = jax.nn.sigmoid(gates[:, 0 * H:1 * H])
            f = jax.nn.sigmoid(gates[:, 1 * H:2 * H])
            g = jnp.tanh(gates[:, 2 * H:3 * H])
            o = jax.nn.sigmoid(gates[:, 3 * H:4 * H])
            c = f * c + i * g
            h = o * jnp.tanh(c)
            outs.append(h)
        x = jnp.stack(outs, axis=1)
    return x[:, -1, :] @ fc_w.T + fc_b


# ----------------------------- main -----------------------------
if __name__ == "__main__":
    B, T = 2, 8           # batch, sequence length
    D = 4                 # input_size = len(FEATURES)
    H = 32                # LSTM_HIDDEN_SIZE
    NUM_LAYERS = 2        # LSTM_NUM_LAYERS (dropout only active between layers in training)

    key = jax.random.PRNGKey(0)
    kx, kp = jax.random.split(key)
    x = jax.random.normal(kx, (B, T, D), jnp.float32)

    lstm_params, fc_w, fc_b = init_params(kp, D, H, NUM_LAYERS)

    out = lstm_model_forward(x, lstm_params, fc_w, fc_b)
    out = jax.block_until_ready(out)

    ref = reference_forward(x, lstm_params, fc_w, fc_b)
    assert out.shape == (B, 1)
    assert jnp.allclose(out, ref, atol=1e-4, rtol=1e-4), (out, ref)

    print("KERNEL_OK")
</pallas_src>

<mosaic_0001>
module attributes {stable_mosaic.version = 11 : i64} {
  func.func @kernel(%arg0: memref<64x4xf32, #tpu.memory_space<vmem>>, %arg1: memref<4x128xf32, #tpu.memory_space<vmem>>, %arg2: memref<32x128xf32, #tpu.memory_space<vmem>>, %arg3: memref<1x128xf32, #tpu.memory_space<vmem>>, %arg4: memref<32x128xf32, #tpu.memory_space<vmem>>, %arg5: memref<32x128xf32, #tpu.memory_space<vmem>>, %arg6: memref<1x128xf32, #tpu.memory_space<vmem>>, %arg7: memref<1x32xf32, #tpu.memory_space<vmem>>, %arg8: memref<1x1xf32, #tpu.memory_space<vmem>>, %arg9: memref<8x1xf32, #tpu.memory_space<vmem>>) attributes {dimension_semantics = [], scalar_prefetch = 0 : i64, scratch_operands = 0 : i64, tpu.core_type = #tpu.core_type<tc>} {
    %0 = tpu.iota {dimensions = array<i32: 1>} : vector<8x128xi32>
    %c64_i32 = arith.constant 64 : i32
    %1 = vector.broadcast %c64_i32 : i32 to vector<8x128xi32>
    %2 = arith.cmpi sge, %0, %1 : vector<8x128xi32>
    %c96_i32 = arith.constant 96 : i32
    %3 = vector.broadcast %c96_i32 : i32 to vector<8x128xi32>
    %4 = arith.cmpi slt, %0, %3 : vector<8x128xi32>
    %5 = arith.andi %2, %4 : vector<8x128xi1>
    %c0 = arith.constant 0 : index
    %c0_0 = arith.constant 0 : index
    %6 = vector.load %arg0[%c0, %c0_0] : memref<64x4xf32, #tpu.memory_space<vmem>>, vector<64x4xf32>
    %c0_1 = arith.constant 0 : index
    %c0_2 = arith.constant 0 : index
    %7 = vector.load %arg1[%c0_1, %c0_2] : memref<4x128xf32, #tpu.memory_space<vmem>>, vector<4x128xf32>
    %c0_3 = arith.constant 0 : index
    %c0_4 = arith.constant 0 : index
    %8 = vector.load %arg2[%c0_3, %c0_4] : memref<32x128xf32, #tpu.memory_space<vmem>>, vector<32x128xf32>
    %c0_5 = arith.constant 0 : index
    %c0_6 = arith.constant 0 : index
    %9 = vector.load %arg3[%c0_5, %c0_6] : memref<1x128xf32, #tpu.memory_space<vmem>>, vector<1x128xf32>
    %cst = arith.constant dense<0.000000e+00> : vector<64x128xf32>
    %10 = tpu.matmul %6, %7, %cst {dimension_numbers = #tpu.dot_dimension_numbers<[1], [0], [0], [1], [0, 0, 1, 1], [], []>} : vector<64x4xf32>, vector<4x128xf32>, vector<64x128xf32> -> vector<64x128xf32>
    %11 = vector.broadcast %9 : vector<1x128xf32> to vector<64x128xf32>
    %12 = arith.addf %10, %11 : vector<64x128xf32>
    %cst_7 = arith.constant 0.000000e+00 : f32
    %13 = vector.broadcast %cst_7 : f32 to vector<8x32xf32>
    %cst_8 = arith.constant 0.000000e+00 : f32
    %14 = vector.broadcast %cst_8 : f32 to vector<8x32xf32>
    %15 = vector.extract_strided_slice %12 {offsets = [0, 0], sizes = [8, 128], strides = [1, 1]} : vector<64x128xf32> to vector<8x128xf32>
    %cst_9 = arith.constant dense<0.000000e+00> : vector<8x128xf32>
    %16 = tpu.matmul %13, %8, %cst_9 {dimension_numbers = #tpu.dot_dimension_numbers<[1], [0], [0], [1], [0, 0, 1, 1], [], []>} : vector<8x32xf32>, vector<32x128xf32>, vector<8x128xf32> -> vector<8x128xf32>
    %17 = arith.addf %15, %16 : vector<8x128xf32>
    %18 = arith.negf %17 : vector<8x128xf32>
    %19 = math.exp %18 : vector<8x128xf32>
    %cst_10 = arith.constant 1.000000e+00 : f32
    %20 = vector.broadcast %cst_10 : f32 to vector<8x128xf32>
    %21 = arith.addf %20, %19 : vector<8x128xf32>
    %22 = arith.divf %20, %21 : vector<8x128xf32>
    %cst_11 = arith.constant 2.000000e+00 : f32
    %23 = vector.broadcast %cst_11 : f32 to vector<8x128xf32>
    %24 = arith.mulf %23, %22 : vector<8x128xf32>
    %cst_12 = arith.constant 1.000000e+00 : f32
    %25 = vector.broadcast %cst_12 : f32 to vector<8x128xf32>
    %26 = arith.subf %24, %25 : vector<8x128xf32>
    %27 = arith.select %5, %26, %22 : vector<8x128xi1>, vector<8x128xf32>
    %28 = vector.extract_strided_slice %27 {offsets = [0, 0], sizes = [8, 32], strides = [1, 1]} : vector<8x128xf32> to vector<8x32xf32>
    %29 = vector.extract_strided_slice %27 {offsets = [0, 32], sizes = [8, 32], strides = [1, 1]} : vector<8x128xf32> to vector<8x32xf32>
    %30 = vector.extract_strided_slice %27 {offsets = [0, 64], sizes = [8, 32], strides = [1, 1]} : vector<8x128xf32> to vector<8x32xf32>
    %31 = vector.extract_strided_slice %27 {offsets = [0, 96], sizes = [8, 32], strides = [1, 1]} : vector<8x128xf32> to vector<8x32xf32>
    %32 = arith.mulf %29, %14 : vector<8x32xf32>
    %33 = arith.mulf %28, %30 : vector<8x32xf32>
    %34 = arith.addf %32, %33 : vector<8x32xf32>
    %35 = math.tanh %34 : vector<8x32xf32>
    %36 = arith.mulf %31, %35 : vector<8x32xf32>
    %37 = vector.extract_strided_slice %12 {offsets = [8, 0], sizes = [8, 128], strides = [1, 1]} : vector<64x128xf32> to vector<8x128xf32>
    %cst_13 = arith.constant dense<0.000000e+00> : vector<8x128xf32>
    %38 = tpu.matmul %36, %8, %cst_13 {dimension_numbers = #tpu.dot_dimension_numbers<[1], [0], [0], [1], [0, 0, 1, 1], [], []>} : vector<8x32xf32>, vector<32x128xf32>, vector<8x128xf32> -> vector<8x128xf32>
    %39 = arith.addf %37, %38 : vector<8x128xf32>
    %40 = arith.negf %39 : vector<8x128xf32>
    %41 = math.exp %40 : vector<8x128xf32>
    %cst_14 = arith.constant 1.000000e+00 : f32
    %42 = vector.broadcast %cst_14 : f32 to vector<8x128xf32>
    %43 = arith.addf %42, %41 : vector<8x128xf32>
    %44 = arith.divf %42, %43 : vector<8x128xf32>
    %cst_15 = arith.constant 2.000000e+00 : f32
    %45 = vector.broadcast %cst_15 : f32 to vector<8x128xf32>
    %46 = arith.mulf %45, %44 : vector<8x128xf32>
    %cst_16 = arith.constant 1.000000e+00 : f32
    %47 = vector.broadcast %cst_16 : f32 to vector<8x128xf32>
    %48 = arith.subf %46, %47 : vector<8x128xf32>
    %49 = arith.select %5, %48, %44 : vector<8x128xi1>, vector<8x128xf32>
    %50 = vector.extract_strided_slice %49 {offsets = [0, 0], sizes = [8, 32], strides = [1, 1]} : vector<8x128xf32> to vector<8x32xf32>
    %51 = vector.extract_strided_slice %49 {offsets = [0, 32], sizes = [8, 32], strides = [1, 1]} : vector<8x128xf32> to vector<8x32xf32>
    %52 = vector.extract_strided_slice %49 {offsets = [0, 64], sizes = [8, 32], strides = [1, 1]} : vector<8x128xf32> to vector<8x32xf32>
    %53 = vector.extract_strided_slice %49 {offsets = [0, 96], sizes = [8, 32], strides = [1, 1]} : vector<8x128xf32> to vector<8x32xf32>
    %54 = arith.mulf %51, %34 : vector<8x32xf32>
    %55 = arith.mulf %50, %52 : vector<8x32xf32>
    %56 = arith.addf %54, %55 : vector<8x32xf32>
    %57 = math.tanh %56 : vector<8x32xf32>
    %58 = arith.mulf %53, %57 : vector<8x32xf32>
    %59 = vector.extract_strided_slice %12 {offsets = [16, 0], sizes = [8, 128], strides = [1, 1]} : vector<64x128xf32> to vector<8x128xf32>
    %cst_17 = arith.constant dense<0.000000e+00> : vector<8x128xf32>
    %60 = tpu.matmul %58, %8, %cst_17 {dimension_numbers = #tpu.dot_dimension_numbers<[1], [0], [0], [1], [0, 0, 1, 1], [], []>} : vector<8x32xf32>, vector<32x128xf32>, vector<8x128xf32> -> vector<8x128xf32>
    %61 = arith.addf %59, %60 : vector<8x128xf32>
    %62 = arith.negf %61 : vector<8x128xf32>
    %63 = math.exp %62 : vector<8x128xf32>
    %cst_18 = arith.constant 1.000000e+00 : f32
    %64 = vector.broadcast %cst_18 : f32 to vector<8x128xf32>
    %65 = arith.addf %64, %63 : vector<8x128xf32>
    %66 = arith.divf %64, %65 : vector<8x128xf32>
    %cst_19 = arith.constant 2.000000e+00 : f32
    %67 = vector.broadcast %cst_19 : f32 to vector<8x128xf32>
    %68 = arith.mulf %67, %66 : vector<8x128xf32>
    %cst_20 = arith.constant 1.000000e+00 : f32
    %69 = vector.broadcast %cst_20 : f32 to vector<8x128xf32>
    %70 = arith.subf %68, %69 : vector<8x128xf32>
    %71 = arith.select %5, %70, %66 : vector<8x128xi1>, vector<8x128xf32>
    %72 = vector.extract_strided_slice %71 {offsets = [0, 0], sizes = [8, 32], strides = [1, 1]} : vector<8x128xf32> to vector<8x32xf32>
    %73 = vector.extract_strided_slice %71 {offsets = [0, 32], sizes = [8, 32], strides = [1, 1]} : vector<8x128xf32> to vector<8x32xf32>
    %74 = vector.extract_strided_slice %71 {offsets = [0, 64], sizes = [8, 32], strides = [1, 1]} : vector<8x128xf32> to vector<8x32xf32>
    %75 = vector.extract_strided_slice %71 {offsets = [0, 96], sizes = [8, 32], strides = [1, 1]} : vector<8x128xf32> to vector<8x32xf32>
    %76 = arith.mulf %73, %56 : vector<8x32xf32>
    %77 = arith.mulf %72, %74 : vector<8x32xf32>
    %78 = arith.addf %76, %77 : vector<8x32xf32>
    %79 = math.tanh %78 : vector<8x32xf32>
    %80 = arith.mulf %75, %79 : vector<8x32xf32>
    %81 = vector.extract_strided_slice %12 {offsets = [24, 0], sizes = [8, 128], strides = [1, 1]} : vector<64x128xf32> to vector<8x128xf32>
    %cst_21 = arith.constant dense<0.000000e+00> : vector<8x128xf32>
    %82 = tpu.matmul %80, %8, %cst_21 {dimension_numbers = #tpu.dot_dimension_numbers<[1], [0], [0], [1], [0, 0, 1, 1], [], []>} : vector<8x32xf32>, vector<32x128xf32>, vector<8x128xf32> -> vector<8x128xf32>
    %83 = arith.addf %81, %82 : vector<8x128xf32>
    %84 = arith.negf %83 : vector<8x128xf32>
    %85 = math.exp %84 : vector<8x128xf32>
    %cst_22 = arith.constant 1.000000e+00 : f32
    %86 = vector.broadcast %cst_22 : f32 to vector<8x128xf32>
    %87 = arith.addf %86, %85 : vector<8x128xf32>
    %88 = arith.divf %86, %87 : vector<8x128xf32>
    %cst_23 = arith.constant 2.000000e+00 : f32
    %89 = vector.broadcast %cst_23 : f32 to vector<8x128xf32>
    %90 = arith.mulf %89, %88 : vector<8x128xf32>
    %cst_24 = arith.constant 1.000000e+00 : f32
    %91 = vector.broadcast %cst_24 : f32 to vector<8x128xf32>
    %92 = arith.subf %90, %91 : vector<8x128xf32>
    %93 = arith.select %5, %92, %88 : vector<8x128xi1>, vector<8x128xf32>
    %94 = vector.extract_strided_slice %93 {offsets = [0, 0], sizes = [8, 32], strides = [1, 1]} : vector<8x128xf32> to vector<8x32xf32>
    %95 = vector.extract_strided_slice %93 {offsets = [0, 32], sizes = [8, 32], strides = [1, 1]} : vector<8x128xf32> to vector<8x32xf32>
    %96 = vector.extract_strided_slice %93 {offsets = [0, 64], sizes = [8, 32], strides = [1, 1]} : vector<8x128xf32> to vector<8x32xf32>
    %97 = vector.extract_strided_slice %93 {offsets = [0, 96], sizes = [8, 32], strides = [1, 1]} : vector<8x128xf32> to vector<8x32xf32>
    %98 = arith.mulf %95, %78 : vector<8x32xf32>
    %99 = arith.mulf %94, %96 : vector<8x32xf32>
    %100 = arith.addf %98, %99 : vector<8x32xf32>
    %101 = math.tanh %100 : vector<8x32xf32>
    %102 = arith.mulf %97, %101 : vector<8x32xf32>
    %103 = vector.extract_strided_slice %12 {offsets = [32, 0], sizes = [8, 128], strides = [1, 1]} : vector<64x128xf32> to vector<8x128xf32>
    %cst_25 = arith.constant dense<0.000000e+00> : vector<8x128xf32>
    %104 = tpu.matmul %102, %8, %cst_25 {dimension_numbers = #tpu.dot_dimension_numbers<[1], [0], [0], [1], [0, 0, 1, 1], [], []>} : vector<8x32xf32>, vector<32x128xf32>, vector<8x128xf32> -> vector<8x128xf32>
    %105 = arith.addf %103, %104 : vector<8x128xf32>
    %106 = arith.negf %105 : vector<8x128xf32>
    %107 = math.exp %106 : vector<8x128xf32>
    %cst_26 = arith.constant 1.000000e+00 : f32
    %108 = vector.broadcast %cst_26 : f32 to vector<8x128xf32>
    %109 = arith.addf %108, %107 : vector<8x128xf32>
    %110 = arith.divf %108, %109 : vector<8x128xf32>
    %cst_27 = arith.constant 2.000000e+00 : f32
    %111 = vector.broadcast %cst_27 : f32 to vector<8x128xf32>
    %112 = arith.mulf %111, %110 : vector<8x128xf32>
    %cst_28 = arith.constant 1.000000e+00 : f32
    %113 = vector.broadcast %cst_28 : f32 to vector<8x128xf32>
    %114 = arith.subf %112, %113 : vector<8x128xf32>
    %115 = arith.select %5, %114, %110 : vector<8x128xi1>, vector<8x128xf32>
    %116 = vector.extract_strided_slice %115 {offsets = [0, 0], sizes = [8, 32], strides = [1, 1]} : vector<8x128xf32> to vector<8x32xf32>
    %117 = vector.extract_strided_slice %115 {offsets = [0, 32], sizes = [8, 32], strides = [1, 1]} : vector<8x128xf32> to vector<8x32xf32>
    %118 = vector.extract_strided_slice %115 {offsets = [0, 64], sizes = [8, 32], strides = [1, 1]} : vector<8x128xf32> to vector<8x32xf32>
    %119 = vector.extract_strided_slice %115 {offsets = [0, 96], sizes = [8, 32], strides = [1, 1]} : vector<8x128xf32> to vector<8x32xf32>
    %120 = arith.mulf %117, %100 : vector<8x32xf32>
    %121 = arith.mulf %116, %118 : vector<8x32xf32>
    %122 = arith.addf %120, %121 : vector<8x32xf32>
    %123 = math.tanh %122 : vector<8x32xf32>
    %124 = arith.mulf %119, %123 : vector<8x32xf32>
    %125 = vector.extract_strided_slice %12 {offsets = [40, 0], sizes = [8, 128], strides = [1, 1]} : vector<64x128xf32> to vector<8x128xf32>
    %cst_29 = arith.constant dense<0.000000e+00> : vector<8x128xf32>
    %126 = tpu.matmul %124, %8, %cst_29 {dimension_numbers = #tpu.dot_dimension_numbers<[1], [0], [0], [1], [0, 0, 1, 1], [], []>} : vector<8x32xf32>, vector<32x128xf32>, vector<8x128xf32> -> vector<8x128xf32>
    %127 = arith.addf %125, %126 : vector<8x128xf32>
    %128 = arith.negf %127 : vector<8x128xf32>
    %129 = math.exp %128 : vector<8x128xf32>
    %cst_30 = arith.constant 1.000000e+00 : f32
    %130 = vector.broadcast %cst_30 : f32 to vector<8x128xf32>
    %131 = arith.addf %130, %129 : vector<8x128xf32>
    %132 = arith.divf %130, %131 : vector<8x128xf32>
    %cst_31 = arith.constant 2.000000e+00 : f32
    %133 = vector.broadcast %cst_31 : f32 to vector<8x128xf32>
    %134 = arith.mulf %133, %132 : vector<8x128xf32>
    %cst_32 = arith.constant 1.000000e+00 : f32
    %135 = vector.broadcast %cst_32 : f32 to vector<8x128xf32>
    %136 = arith.subf %134, %135 : vector<8x128xf32>
    %137 = arith.select %5, %136, %132 : vector<8x128xi1>, vector<8x128xf32>
    %138 = vector.extract_strided_slice %137 {offsets = [0, 0], sizes = [8, 32], strides = [1, 1]} : vector<8x128xf32> to vector<8x32xf32>
    %139 = vector.extract_strided_slice %137 {offsets = [0, 32], sizes = [8, 32], strides = [1, 1]} : vector<8x128xf32> to vector<8x32xf32>
    %140 = vector.extract_strided_slice %137 {offsets = [0, 64], sizes = [8, 32], strides = [1, 1]} : vector<8x128xf32> to vector<8x32xf32>
    %141 = vector.extract_strided_slice %137 {offsets = [0, 96], sizes = [8, 32], strides = [1, 1]} : vector<8x128xf32> to vector<8x32xf32>
    %142 = arith.mulf %139, %122 : vector<8x32xf32>
    %143 = arith.mulf %138, %140 : vector<8x32xf32>
    %144 = arith.addf %142, %143 : vector<8x32xf32>
    %145 = math.tanh %144 : vector<8x32xf32>
    %146 = arith.mulf %141, %145 : vector<8x32xf32>
    %147 = vector.extract_strided_slice %12 {offsets = [48, 0], sizes = [8, 128], strides = [1, 1]} : vector<64x128xf32> to vector<8x128xf32>
    %cst_33 = arith.constant dense<0.000000e+00> : vector<8x128xf32>
    %148 = tpu.matmul %146, %8, %cst_33 {dimension_numbers = #tpu.dot_dimension_numbers<[1], [0], [0], [1], [0, 0, 1, 1], [], []>} : vector<8x32xf32>, vector<32x128xf32>, vector<8x128xf32> -> vector<8x128xf32>
    %149 = arith.addf %147, %148 : vector<8x128xf32>
    %150 = arith.negf %149 : vector<8x128xf32>
    %151 = math.exp %150 : vector<8x128xf32>
    %cst_34 = arith.constant 1.000000e+00 : f32
    %152 = vector.broadcast %cst_34 : f32 to vector<8x128xf32>
    %153 = arith.addf %152, %151 : vector<8x128xf32>
    %154 = arith.divf %152, %153 : vector<8x128xf32>
    %cst_35 = arith.constant 2.000000e+00 : f32
    %155 = vector.broadcast %cst_35 : f32 to vector<8x128xf32>
    %156 = arith.mulf %155, %154 : vector<8x128xf32>
    %cst_36 = arith.constant 1.000000e+00 : f32
    %157 = vector.broadcast %cst_36 : f32 to vector<8x128xf32>
    %158 = arith.subf %156, %157 : vector<8x128xf32>
    %159 = arith.select %5, %158, %154 : vector<8x128xi1>, vector<8x128xf32>
    %160 = vector.extract_strided_slice %159 {offsets = [0, 0], sizes = [8, 32], strides = [1, 1]} : vector<8x128xf32> to vector<8x32xf32>
    %161 = vector.extract_strided_slice %159 {offsets = [0, 32], sizes = [8, 32], strides = [1, 1]} : vector<8x128xf32> to vector<8x32xf32>
    %162 = vector.extract_strided_slice %159 {offsets = [0, 64], sizes = [8, 32], strides = [1, 1]} : vector<8x128xf32> to vector<8x32xf32>
    %163 = vector.extract_strided_slice %159 {offsets = [0, 96], sizes = [8, 32], strides = [1, 1]} : vector<8x128xf32> to vector<8x32xf32>
    %164 = arith.mulf %161, %144 : vector<8x32xf32>
    %165 = arith.mulf %160, %162 : vector<8x32xf32>
    %166 = arith.addf %164, %165 : vector<8x32xf32>
    %167 = math.tanh %166 : vector<8x32xf32>
    %168 = arith.mulf %163, %167 : vector<8x32xf32>
    %169 = vector.extract_strided_slice %12 {offsets = [56, 0], sizes = [8, 128], strides = [1, 1]} : vector<64x128xf32> to vector<8x128xf32>
    %cst_37 = arith.constant dense<0.000000e+00> : vector<8x128xf32>
    %170 = tpu.matmul %168, %8, %cst_37 {dimension_numbers = #tpu.dot_dimension_numbers<[1], [0], [0], [1], [0, 0, 1, 1], [], []>} : vector<8x32xf32>, vector<32x128xf32>, vector<8x128xf32> -> vector<8x128xf32>
    %171 = arith.addf %169, %170 : vector<8x128xf32>
    %172 = arith.negf %171 : vector<8x128xf32>
    %173 = math.exp %172 : vector<8x128xf32>
    %cst_38 = arith.constant 1.000000e+00 : f32
    %174 = vector.broadcast %cst_38 : f32 to vector<8x128xf32>
    %175 = arith.addf %174, %173 : vector<8x128xf32>
    %176 = arith.divf %174, %175 : vector<8x128xf32>
    %cst_39 = arith.constant 2.000000e+00 : f32
    %177 = vector.broadcast %cst_39 : f32 to vector<8x128xf32>
    %178 = arith.mulf %177, %176 : vector<8x128xf32>
    %cst_40 = arith.constant 1.000000e+00 : f32
    %179 = vector.broadcast %cst_40 : f32 to vector<8x128xf32>
    %180 = arith.subf %178, %179 : vector<8x128xf32>
    %181 = arith.select %5, %180, %176 : vector<8x128xi1>, vector<8x128xf32>
    %182 = vector.extract_strided_slice %181 {offsets = [0, 0], sizes = [8, 32], strides = [1, 1]} : vector<8x128xf32> to vector<8x32xf32>
    %183 = vector.extract_strided_slice %181 {offsets = [0, 32], sizes = [8, 32], strides = [1, 1]} : vector<8x128xf32> to vector<8x32xf32>
    %184 = vector.extract_strided_slice %181 {offsets = [0, 64], sizes = [8, 32], strides = [1, 1]} : vector<8x128xf32> to vector<8x32xf32>
    %185 = vector.extract_strided_slice %181 {offsets = [0, 96], sizes = [8, 32], strides = [1, 1]} : vector<8x128xf32> to vector<8x32xf32>
    %186 = arith.mulf %183, %166 : vector<8x32xf32>
    %187 = arith.mulf %182, %184 : vector<8x32xf32>
    %188 = arith.addf %186, %187 : vector<8x32xf32>
    %189 = math.tanh %188 : vector<8x32xf32>
    %190 = arith.mulf %185, %189 : vector<8x32xf32>
    %191 = tpu.concatenate %36, %58, %80, %102, %124, %146, %168, %190 in 0 : vector<8x32xf32>, vector<8x32xf32>, vector<8x32xf32>, vector<8x32xf32>, vector<8x32xf32>, vector<8x32xf32>, vector<8x32xf32>, vector<8x32xf32> -> vector<64x32xf32>
    %c0_41 = arith.constant 0 : index
    %c0_42 = arith.constant 0 : index
    %192 = vector.load %arg4[%c0_41, %c0_42] : memref<32x128xf32, #tpu.memory_space<vmem>>, vector<32x128xf32>
    %c0_43 = arith.constant 0 : index
    %c0_44 = arith.constant 0 : index
    %193 = vector.load %arg5[%c0_43, %c0_44] : memref<32x128xf32, #tpu.memory_space<vmem>>, vector<32x128xf32>
    %c0_45 = arith.constant 0 : index
    %c0_46 = arith.constant 0 : index
    %194 = vector.load %arg6[%c0_45, %c0_46] : memref<1x128xf32, #tpu.memory_space<vmem>>, vector<1x128xf32>
    %cst_47 = arith.constant dense<0.000000e+00> : vector<64x128xf32>
    %195 = tpu.matmul %191, %192, %cst_47 {dimension_numbers = #tpu.dot_dimension_numbers<[1], [0], [0], [1], [0, 0, 1, 1], [], []>} : vector<64x32xf32>, vector<32x128xf32>, vector<64x128xf32> -> vector<64x128xf32>
    %196 = vector.broadcast %194 : vector<1x128xf32> to vector<64x128xf32>
    %197 = arith.addf %195, %196 : vector<64x128xf32>
    %cst_48 = arith.constant 0.000000e+00 : f32
    %198 = vector.broadcast %cst_48 : f32 to vector<8x32xf32>
    %cst_49 = arith.constant 0.000000e+00 : f32
    %199 = vector.broadcast %cst_49 : f32 to vector<8x32xf32>
    %200 = vector.extract_strided_slice %197 {offsets = [0, 0], sizes = [8, 128], strides = [1, 1]} : vector<64x128xf32> to vector<8x128xf32>
    %cst_50 = arith.constant dense<0.000000e+00> : vector<8x128xf32>
    %201 = tpu.matmul %198, %193, %cst_50 {dimension_numbers = #tpu.dot_dimension_numbers<[1], [0], [0], [1], [0, 0, 1, 1], [], []>} : vector<8x32xf32>, vector<32x128xf32>, vector<8x128xf32> -> vector<8x128xf32>
    %202 = arith.addf %200, %201 : vector<8x128xf32>
    %203 = arith.negf %202 : vector<8x128xf32>
    %204 = math.exp %203 : vector<8x128xf32>
    %cst_51 = arith.constant 1.000000e+00 : f32
    %205 = vector.broadcast %cst_51 : f32 to vector<8x128xf32>
    %206 = arith.addf %205, %204 : vector<8x128xf32>
    %207 = arith.divf %205, %206 : vector<8x128xf32>
    %cst_52 = arith.constant 2.000000e+00 : f32
    %208 = vector.broadcast %cst_52 : f32 to vector<8x128xf32>
    %209 = arith.mulf %208, %207 : vector<8x128xf32>
    %cst_53 = arith.constant 1.000000e+00 : f32
    %210 = vector.broadcast %cst_53 : f32 to vector<8x128xf32>
    %211 = arith.subf %209, %210 : vector<8x128xf32>
    %212 = arith.select %5, %211, %207 : vector<8x128xi1>, vector<8x128xf32>
    %213 = vector.extract_strided_slice %212 {offsets = [0, 0], sizes = [8, 32], strides = [1, 1]} : vector<8x128xf32> to vector<8x32xf32>
    %214 = vector.extract_strided_slice %212 {offsets = [0, 32], sizes = [8, 32], strides = [1, 1]} : vector<8x128xf32> to vector<8x32xf32>
    %215 = vector.extract_strided_slice %212 {offsets = [0, 64], sizes = [8, 32], strides = [1, 1]} : vector<8x128xf32> to vector<8x32xf32>
    %216 = vector.extract_strided_slice %212 {offsets = [0, 96], sizes = [8, 32], strides = [1, 1]} : vector<8x128xf32> to vector<8x32xf32>
    %217 = arith.mulf %214, %199 : vector<8x32xf32>
    %218 = arith.mulf %213, %215 : vector<8x32xf32>
    %219 = arith.addf %217, %218 : vector<8x32xf32>
    %220 = math.tanh %219 : vector<8x32xf32>
    %221 = arith.mulf %216, %220 : vector<8x32xf32>
    %222 = vector.extract_strided_slice %197 {offsets = [8, 0], sizes = [8, 128], strides = [1, 1]} : vector<64x128xf32> to vector<8x128xf32>
    %cst_54 = arith.constant dense<0.000000e+00> : vector<8x128xf32>
    %223 = tpu.matmul %221, %193, %cst_54 {dimension_numbers = #tpu.dot_dimension_numbers<[1], [0], [0], [1], [0, 0, 1, 1], [], []>} : vector<8x32xf32>, vector<32x128xf32>, vector<8x128xf32> -> vector<8x128xf32>
    %224 = arith.addf %222, %223 : vector<8x128xf32>
    %225 = arith.negf %224 : vector<8x128xf32>
    %226 = math.exp %225 : vector<8x128xf32>
    %cst_55 = arith.constant 1.000000e+00 : f32
    %227 = vector.broadcast %cst_55 : f32 to vector<8x128xf32>
    %228 = arith.addf %227, %226 : vector<8x128xf32>
    %229 = arith.divf %227, %228 : vector<8x128xf32>
    %cst_56 = arith.constant 2.000000e+00 : f32
    %230 = vector.broadcast %cst_56 : f32 to vector<8x128xf32>
    %231 = arith.mulf %230, %229 : vector<8x128xf32>
    %cst_57 = arith.constant 1.000000e+00 : f32
    %232 = vector.broadcast %cst_57 : f32 to vector<8x128xf32>
    %233 = arith.subf %231, %232 : vector<8x128xf32>
    %234 = arith.select %5, %233, %229 : vector<8x128xi1>, vector<8x128xf32>
    %235 = vector.extract_strided_slice %234 {offsets = [0, 0], sizes = [8, 32], strides = [1, 1]} : vector<8x128xf32> to vector<8x32xf32>
    %236 = vector.extract_strided_slice %234 {offsets = [0, 32], sizes = [8, 32], strides = [1, 1]} : vector<8x128xf32> to vector<8x32xf32>
    %237 = vector.extract_strided_slice %234 {offsets = [0, 64], sizes = [8, 32], strides = [1, 1]} : vector<8x128xf32> to vector<8x32xf32>
    %238 = vector.extract_strided_slice %234 {offsets = [0, 96], sizes = [8, 32], strides = [1, 1]} : vector<8x128xf32> to vector<8x32xf32>
    %239 = arith.mulf %236, %219 : vector<8x32xf32>
    %240 = arith.mulf %235, %237 : vector<8x32xf32>
    %241 = arith.addf %239, %240 : vector<8x32xf32>
    %242 = math.tanh %241 : vector<8x32xf32>
    %243 = arith.mulf %238, %242 : vector<8x32xf32>
    %244 = vector.extract_strided_slice %197 {offsets = [16, 0], sizes = [8, 128], strides = [1, 1]} : vector<64x128xf32> to vector<8x128xf32>
    %cst_58 = arith.constant dense<0.000000e+00> : vector<8x128xf32>
    %245 = tpu.matmul %243, %193, %cst_58 {dimension_numbers = #tpu.dot_dimension_numbers<[1], [0], [0], [1], [0, 0, 1, 1], [], []>} : vector<8x32xf32>, vector<32x128xf32>, vector<8x128xf32> -> vector<8x128xf32>
    %246 = arith.addf %244, %245 : vector<8x128xf32>
    %247 = arith.negf %246 : vector<8x128xf32>
    %248 = math.exp %247 : vector<8x128xf32>
    %cst_59 = arith.constant 1.000000e+00 : f32
    %249 = vector.broadcast %cst_59 : f32 to vector<8x128xf32>
    %250 = arith.addf %249, %248 : vector<8x128xf32>
    %251 = arith.divf %249, %250 : vector<8x128xf32>
    %cst_60 = arith.constant 2.000000e+00 : f32
    %252 = vector.broadcast %cst_60 : f32 to vector<8x128xf32>
    %253 = arith.mulf %252, %251 : vector<8x128xf32>
    %cst_61 = arith.constant 1.000000e+00 : f32
    %254 = vector.broadcast %cst_61 : f32 to vector<8x128xf32>
    %255 = arith.subf %253, %254 : vector<8x128xf32>
    %256 = arith.select %5, %255, %251 : vector<8x128xi1>, vector<8x128xf32>
    %257 = vector.extract_strided_slice %256 {offsets = [0, 0], sizes = [8, 32], strides = [1, 1]} : vector<8x128xf32> to vector<8x32xf32>
    %258 = vector.extract_strided_slice %256 {offsets = [0, 32], sizes = [8, 32], strides = [1, 1]} : vector<8x128xf32> to vector<8x32xf32>
    %259 = vector.extract_strided_slice %256 {offsets = [0, 64], sizes = [8, 32], strides = [1, 1]} : vector<8x128xf32> to vector<8x32xf32>
    %260 = vector.extract_strided_slice %256 {offsets = [0, 96], sizes = [8, 32], strides = [1, 1]} : vector<8x128xf32> to vector<8x32xf32>
    %261 = arith.mulf %258, %241 : vector<8x32xf32>
    %262 = arith.mulf %257, %259 : vector<8x32xf32>
    %263 = arith.addf %261, %262 : vector<8x32xf32>
    %264 = math.tanh %263 : vector<8x32xf32>
    %265 = arith.mulf %260, %264 : vector<8x32xf32>
    %266 = vector.extract_strided_slice %197 {offsets = [24, 0], sizes = [8, 128], strides = [1, 1]} : vector<64x128xf32> to vector<8x128xf32>
    %cst_62 = arith.constant dense<0.000000e+00> : vector<8x128xf32>
    %267 = tpu.matmul %265, %193, %cst_62 {dimension_numbers = #tpu.dot_dimension_numbers<[1], [0], [0], [1], [0, 0, 1, 1], [], []>} : vector<8x32xf32>, vector<32x128xf32>, vector<8x128xf32> -> vector<8x128xf32>
    %268 = arith.addf %266, %267 : vector<8x128xf32>
    %269 = arith.negf %268 : vector<8x128xf32>
    %270 = math.exp %269 : vector<8x128xf32>
    %cst_63 = arith.constant 1.000000e+00 : f32
    %271 = vector.broadcast %cst_63 : f32 to vector<8x128xf32>
    %272 = arith.addf %271, %270 : vector<8x128xf32>
    %273 = arith.divf %271, %272 : vector<8x128xf32>
    %cst_64 = arith.constant 2.000000e+00 : f32
    %274 = vector.broadcast %cst_64 : f32 to vector<8x128xf32>
    %275 = arith.mulf %274, %273 : vector<8x128xf32>
    %cst_65 = arith.constant 1.000000e+00 : f32
    %276 = vector.broadcast %cst_65 : f32 to vector<8x128xf32>
    %277 = arith.subf %275, %276 : vector<8x128xf32>
    %278 = arith.select %5, %277, %273 : vector<8x128xi1>, vector<8x128xf32>
    %279 = vector.extract_strided_slice %278 {offsets = [0, 0], sizes = [8, 32], strides = [1, 1]} : vector<8x128xf32> to vector<8x32xf32>
    %280 = vector.extract_strided_slice %278 {offsets = [0, 32], sizes = [8, 32], strides = [1, 1]} : vector<8x128xf32> to vector<8x32xf32>
    %281 = vector.extract_strided_slice %278 {offsets = [0, 64], sizes = [8, 32], strides = [1, 1]} : vector<8x128xf32> to vector<8x32xf32>
    %282 = vector.extract_strided_slice %278 {offsets = [0, 96], sizes = [8, 32], strides = [1, 1]} : vector<8x128xf32> to vector<8x32xf32>
    %283 = arith.mulf %280, %263 : vector<8x32xf32>
    %284 = arith.mulf %279, %281 : vector<8x32xf32>
    %285 = arith.addf %283, %284 : vector<8x32xf32>
    %286 = math.tanh %285 : vector<8x32xf32>
    %287 = arith.mulf %282, %286 : vector<8x32xf32>
    %288 = vector.extract_strided_slice %197 {offsets = [32, 0], sizes = [8, 128], strides = [1, 1]} : vector<64x128xf32> to vector<8x128xf32>
    %cst_66 = arith.constant dense<0.000000e+00> : vector<8x128xf32>
    %289 = tpu.matmul %287, %193, %cst_66 {dimension_numbers = #tpu.dot_dimension_numbers<[1], [0], [0], [1], [0, 0, 1, 1], [], []>} : vector<8x32xf32>, vector<32x128xf32>, vector<8x128xf32> -> vector<8x128xf32>
    %290 = arith.addf %288, %289 : vector<8x128xf32>
    %291 = arith.negf %290 : vector<8x128xf32>
    %292 = math.exp %291 : vector<8x128xf32>
    %cst_67 = arith.constant 1.000000e+00 : f32
    %293 = vector.broadcast %cst_67 : f32 to vector<8x128xf32>
    %294 = arith.addf %293, %292 : vector<8x128xf32>
    %295 = arith.divf %293, %294 : vector<8x128xf32>
    %cst_68 = arith.constant 2.000000e+00 : f32
    %296 = vector.broadcast %cst_68 : f32 to vector<8x128xf32>
    %297 = arith.mulf %296, %295 : vector<8x128xf32>
    %cst_69 = arith.constant 1.000000e+00 : f32
    %298 = vector.broadcast %cst_69 : f32 to vector<8x128xf32>
    %299 = arith.subf %297, %298 : vector<8x128xf32>
    %300 = arith.select %5, %299, %295 : vector<8x128xi1>, vector<8x128xf32>
    %301 = vector.extract_strided_slice %300 {offsets = [0, 0], sizes = [8, 32], strides = [1, 1]} : vector<8x128xf32> to vector<8x32xf32>
    %302 = vector.extract_strided_slice %300 {offsets = [0, 32], sizes = [8, 32], strides = [1, 1]} : vector<8x128xf32> to vector<8x32xf32>
    %303 = vector.extract_strided_slice %300 {offsets = [0, 64], sizes = [8, 32], strides = [1, 1]} : vector<8x128xf32> to vector<8x32xf32>
    %304 = vector.extract_strided_slice %300 {offsets = [0, 96], sizes = [8, 32], strides = [1, 1]} : vector<8x128xf32> to vector<8x32xf32>
    %305 = arith.mulf %302, %285 : vector<8x32xf32>
    %306 = arith.mulf %301, %303 : vector<8x32xf32>
    %307 = arith.addf %305, %306 : vector<8x32xf32>
    %308 = math.tanh %307 : vector<8x32xf32>
    %309 = arith.mulf %304, %308 : vector<8x32xf32>
    %310 = vector.extract_strided_slice %197 {offsets = [40, 0], sizes = [8, 128], strides = [1, 1]} : vector<64x128xf32> to vector<8x128xf32>
    %cst_70 = arith.constant dense<0.000000e+00> : vector<8x128xf32>
    %311 = tpu.matmul %309, %193, %cst_70 {dimension_numbers = #tpu.dot_dimension_numbers<[1], [0], [0], [1], [0, 0, 1, 1], [], []>} : vector<8x32xf32>, vector<32x128xf32>, vector<8x128xf32> -> vector<8x128xf32>
    %312 = arith.addf %310, %311 : vector<8x128xf32>
    %313 = arith.negf %312 : vector<8x128xf32>
    %314 = math.exp %313 : vector<8x128xf32>
    %cst_71 = arith.constant 1.000000e+00 : f32
    %315 = vector.broadcast %cst_71 : f32 to vector<8x128xf32>
    %316 = arith.addf %315, %314 : vector<8x128xf32>
    %317 = arith.divf %315, %316 : vector<8x128xf32>
    %cst_72 = arith.constant 2.000000e+00 : f32
    %318 = vector.broadcast %cst_72 : f32 to vector<8x128xf32>
    %319 = arith.mulf %318, %317 : vector<8x128xf32>
    %cst_73 = arith.constant 1.000000e+00 : f32
    %320 = vector.broadcast %cst_73 : f32 to vector<8x128xf32>
    %321 = arith.subf %319, %320 : vector<8x128xf32>
    %322 = arith.select %5, %321, %317 : vector<8x128xi1>, vector<8x128xf32>
    %323 = vector.extract_strided_slice %322 {offsets = [0, 0], sizes = [8, 32], strides = [1, 1]} : vector<8x128xf32> to vector<8x32xf32>
    %324 = vector.extract_strided_slice %322 {offsets = [0, 32], sizes = [8, 32], strides = [1, 1]} : vector<8x128xf32> to vector<8x32xf32>
    %325 = vector.extract_strided_slice %322 {offsets = [0, 64], sizes = [8, 32], strides = [1, 1]} : vector<8x128xf32> to vector<8x32xf32>
    %326 = vector.extract_strided_slice %322 {offsets = [0, 96], sizes = [8, 32], strides = [1, 1]} : vector<8x128xf32> to vector<8x32xf32>
    %327 = arith.mulf %324, %307 : vector<8x32xf32>
    %328 = arith.mulf %323, %325 : vector<8x32xf32>
    %329 = arith.addf %327, %328 : vector<8x32xf32>
    %330 = math.tanh %329 : vector<8x32xf32>
    %331 = arith.mulf %326, %330 : vector<8x32xf32>
    %332 = vector.extract_strided_slice %197 {offsets = [48, 0], sizes = [8, 128], strides = [1, 1]} : vector<64x128xf32> to vector<8x128xf32>
    %cst_74 = arith.constant dense<0.000000e+00> : vector<8x128xf32>
    %333 = tpu.matmul %331, %193, %cst_74 {dimension_numbers = #tpu.dot_dimension_numbers<[1], [0], [0], [1], [0, 0, 1, 1], [], []>} : vector<8x32xf32>, vector<32x128xf32>, vector<8x128xf32> -> vector<8x128xf32>
    %334 = arith.addf %332, %333 : vector<8x128xf32>
    %335 = arith.negf %334 : vector<8x128xf32>
    %336 = math.exp %335 : vector<8x128xf32>
    %cst_75 = arith.constant 1.000000e+00 : f32
    %337 = vector.broadcast %cst_75 : f32 to vector<8x128xf32>
    %338 = arith.addf %337, %336 : vector<8x128xf32>
    %339 = arith.divf %337, %338 : vector<8x128xf32>
    %cst_76 = arith.constant 2.000000e+00 : f32
    %340 = vector.broadcast %cst_76 : f32 to vector<8x128xf32>
    %341 = arith.mulf %340, %339 : vector<8x128xf32>
    %cst_77 = arith.constant 1.000000e+00 : f32
    %342 = vector.broadcast %cst_77 : f32 to vector<8x128xf32>
    %343 = arith.subf %341, %342 : vector<8x128xf32>
    %344 = arith.select %5, %343, %339 : vector<8x128xi1>, vector<8x128xf32>
    %345 = vector.extract_strided_slice %344 {offsets = [0, 0], sizes = [8, 32], strides = [1, 1]} : vector<8x128xf32> to vector<8x32xf32>
    %346 = vector.extract_strided_slice %344 {offsets = [0, 32], sizes = [8, 32], strides = [1, 1]} : vector<8x128xf32> to vector<8x32xf32>
    %347 = vector.extract_strided_slice %344 {offsets = [0, 64], sizes = [8, 32], strides = [1, 1]} : vector<8x128xf32> to vector<8x32xf32>
    %348 = vector.extract_strided_slice %344 {offsets = [0, 96], sizes = [8, 32], strides = [1, 1]} : vector<8x128xf32> to vector<8x32xf32>
    %349 = arith.mulf %346, %329 : vector<8x32xf32>
    %350 = arith.mulf %345, %347 : vector<8x32xf32>
    %351 = arith.addf %349, %350 : vector<8x32xf32>
    %352 = math.tanh %351 : vector<8x32xf32>
    %353 = arith.mulf %348, %352 : vector<8x32xf32>
    %354 = vector.extract_strided_slice %197 {offsets = [56, 0], sizes = [8, 128], strides = [1, 1]} : vector<64x128xf32> to vector<8x128xf32>
    %cst_78 = arith.constant dense<0.000000e+00> : vector<8x128xf32>
    %355 = tpu.matmul %353, %193, %cst_78 {dimension_numbers = #tpu.dot_dimension_numbers<[1], [0], [0], [1], [0, 0, 1, 1], [], []>} : vector<8x32xf32>, vector<32x128xf32>, vector<8x128xf32> -> vector<8x128xf32>
    %356 = arith.addf %354, %355 : vector<8x128xf32>
    %357 = arith.negf %356 : vector<8x128xf32>
    %358 = math.exp %357 : vector<8x128xf32>
    %cst_79 = arith.constant 1.000000e+00 : f32
    %359 = vector.broadcast %cst_79 : f32 to vector<8x128xf32>
    %360 = arith.addf %359, %358 : vector<8x128xf32>
    %361 = arith.divf %359, %360 : vector<8x128xf32>
    %cst_80 = arith.constant 2.000000e+00 : f32
    %362 = vector.broadcast %cst_80 : f32 to vector<8x128xf32>
    %363 = arith.mulf %362, %361 : vector<8x128xf32>
    %cst_81 = arith.constant 1.000000e+00 : f32
    %364 = vector.broadcast %cst_81 : f32 to vector<8x128xf32>
    %365 = arith.subf %363, %364 : vector<8x128xf32>
    %366 = arith.select %5, %365, %361 : vector<8x128xi1>, vector<8x128xf32>
    %367 = vector.extract_strided_slice %366 {offsets = [0, 0], sizes = [8, 32], strides = [1, 1]} : vector<8x128xf32> to vector<8x32xf32>
    %368 = vector.extract_strided_slice %366 {offsets = [0, 32], sizes = [8, 32], strides = [1, 1]} : vector<8x128xf32> to vector<8x32xf32>
    %369 = vector.extract_strided_slice %366 {offsets = [0, 64], sizes = [8, 32], strides = [1, 1]} : vector<8x128xf32> to vector<8x32xf32>
    %370 = vector.extract_strided_slice %366 {offsets = [0, 96], sizes = [8, 32], strides = [1, 1]} : vector<8x128xf32> to vector<8x32xf32>
    %371 = arith.mulf %368, %351 : vector<8x32xf32>
    %372 = arith.mulf %367, %369 : vector<8x32xf32>
    %373 = arith.addf %371, %372 : vector<8x32xf32>
    %374 = math.tanh %373 : vector<8x32xf32>
    %375 = arith.mulf %370, %374 : vector<8x32xf32>
    %c0_82 = arith.constant 0 : index
    %c0_83 = arith.constant 0 : index
    %376 = vector.load %arg7[%c0_82, %c0_83] : memref<1x32xf32, #tpu.memory_space<vmem>>, vector<1x32xf32>
    %377 = vector.broadcast %376 : vector<1x32xf32> to vector<8x32xf32>
    %378 = arith.mulf %375, %377 : vector<8x32xf32>
    %cst_84 = arith.constant dense<0.000000e+00> : vector<8xf32>
    %379 = vector.multi_reduction <add>, %378, %cst_84 [1] : vector<8x32xf32> to vector<8xf32>
    %380 = vector.shape_cast %379 : vector<8xf32> to vector<8x1xf32>
    %c0_85 = arith.constant 0 : index
    %c0_86 = arith.constant 0 : index
    %381 = vector.load %arg8[%c0_85, %c0_86] : memref<1x1xf32, #tpu.memory_space<vmem>>, vector<1x1xf32>
    %382 = vector.broadcast %381 : vector<1x1xf32> to vector<8x1xf32>
    %383 = arith.addf %380, %382 : vector<8x1xf32>
    %c0_87 = arith.constant 0 : index
    %c0_88 = arith.constant 0 : index
    %384 = vector.load %arg9[%c0_87, %c0_88] : memref<8x1xf32, #tpu.memory_space<vmem>>, vector<8x1xf32>
    tpu.vector_store %arg9[%c0_87, %c0_88], %383 {strides = array<i32>} : memref<8x1xf32, #tpu.memory_space<vmem>>, vector<8x1xf32>,
    return
  }
}

</mosaic_0001>

<llo_original>
// kernel: tpu_custom_call.1
$region0: #{tpu_custom_call.1}
  #allocation0 [shape = 'u32[]', space=smem, size = 0x4, offset = 0x4, fixed_abs, tag = 'smem constant byte address 0x4 - core index']
  #allocation1 [shape = 'u32[144,128]{1,0:T(1,128)}', space=vmem, size = 0x12000, scoped, tag = 'internal scratch']
  #allocation2 [shape = 'f32[1,1]{1,0:T(1,128)S(1)}', space=vmem, size = 0x200, scoped, tag = 'scoped memory for tpu_custom_call.1']
  %s0 = inlined_call_operand.vmem [shape: f32[64,4], index: 0, kind: input, shape index: {}]
  %s1 = inlined_call_operand.vmem [shape: f32[4,128], index: 1, kind: input, shape index: {}]
  %s2 = inlined_call_operand.vmem [shape: f32[32,128], index: 2, kind: input, shape index: {}]
  %s3 = inlined_call_operand.vmem [shape: f32[1,128], index: 3, kind: input, shape index: {}]
  %s4 = inlined_call_operand.vmem [shape: f32[32,128], index: 4, kind: input, shape index: {}]
  %s5 = inlined_call_operand.hbm [shape: f32[32,128], index: 5, kind: input, shape index: {}]
  %s6 = inlined_call_operand.vmem [shape: f32[1,128], index: 6, kind: input, shape index: {}]
  %s7 = inlined_call_operand.vmem [shape: f32[1,32], index: 7, kind: input, shape index: {}]
  %s8 = inlined_call_operand.<no memory space> [shape: f32[1,1], index: 8, kind: input, shape index: {}]
  %s9 = inlined_call_operand.vmem [shape: f32[8,1], index: 9, kind: output, shape index: {}]
  %s10 = sld [smem:[#allocation0]]
  $region50: #{tpu_custom_call.1} parent=0
    _
  %s12 = ssub.s32 1, %s10
  %s13 = scalar_select 0, %s12, %s10
  %v14 = vstv %s8
  %15 = vst [vmem:[#allocation2] sm:$0x1] %v14
  $region1: #{tpu_custom_call.1} parent=0
    #allocation3 [shape = 'u8[16384]{0}', space=vmem, size = 0x4000, scoped, tag = 'input window, operand 5, single buffered']
    #allocation4 [shape = 's32[1]{0}', space=sflag, size = 0x4, scoped, tag = 'scoped memory for tpu_custom_call.1']
    %16 = vsyncpa [#allocation4], 0
    // Predicated region
    $region2: #{tpu_custom_call.1} parent=1 // pred_check
      _
    $region3: #{tpu_custom_call.1} parent=1 // pred_check_branch
      %18 = sbr.rel (0) target = $region5
    $region4: #{tpu_custom_call.1} parent=1 // pred_region
      _
    $region5: #{tpu_custom_call.1} parent=1 // pred_fallthru
      _
    // Predicated region
    $region6: #{tpu_custom_call.1} parent=1 // pred_check
      _
    $region7: #{tpu_custom_call.1} parent=1 // pred_check_branch
      %20 = sbr.rel (0) target = $region9
    $region8: #{tpu_custom_call.1} parent=1 // pred_region
      _
    $region9: #{tpu_custom_call.1} parent=1 // pred_fallthru
      _
    // Predicated region
    $region10: #{tpu_custom_call.1} parent=1 // pred_check
      _
    $region11: #{tpu_custom_call.1} parent=1 // pred_check_branch
      %22 = sbr.rel (0) target = $region13
    $region12: #{tpu_custom_call.1} parent=1 // pred_region
      _
    $region13: #{tpu_custom_call.1} parent=1 // pred_fallthru
      _
    // Predicated region
    $region14: #{tpu_custom_call.1} parent=1 // pred_check
      _
    $region15: #{tpu_custom_call.1} parent=1 // pred_check_branch
      %24 = sbr.rel (0) target = $region17
    $region16: #{tpu_custom_call.1} parent=1 // pred_region
      _
    $region17: #{tpu_custom_call.1} parent=1 // pred_fallthru
      _
    // Predicated region
    $region18: #{tpu_custom_call.1} parent=1 // pred_check
      _
    $region19: #{tpu_custom_call.1} parent=1 // pred_check_branch
      %26 = sbr.rel (0) target = $region21
    $region20: #{tpu_custom_call.1} parent=1 // pred_region
      _
    $region21: #{tpu_custom_call.1} parent=1 // pred_fallthru
      _
    // Predicated region
    $region22: #{tpu_custom_call.1} parent=1 // pred_check
      _
    $region23: #{tpu_custom_call.1} parent=1 // pred_check_branch
      %28 = sbr.rel (0) target = $region25
    $region24: #{tpu_custom_call.1} parent=1 // pred_region
      %s30 = ssub.s32 512, 512
      %31 = vsyncadd [#allocation4], %s30
      %s32 = sshll.u32 [#allocation3], 4
      %s33 = int_to_ptr.vmem [resolvable:$true] %s32
      %38 = dma.hbm_to_vmem [thread:$0]  %s5, 512, %s33, [#allocation4], 128, 128, 8
    $region25: #{tpu_custom_call.1} parent=1 // pred_fallthru
      _
    // Predicated region
    $region26: #{tpu_custom_call.1} parent=1 // pred_check
      _
    $region27: #{tpu_custom_call.1} parent=1 // pred_check_branch
      %40 = sbr.rel (0) target = $region29
    $region28: #{tpu_custom_call.1} parent=1 // pred_region
      _
    $region29: #{tpu_custom_call.1} parent=1 // pred_fallthru
      _
    // Predicated region
    $region30: #{tpu_custom_call.1} parent=1 // pred_check
      _
    $region31: #{tpu_custom_call.1} parent=1 // pred_check_branch
      %42 = sbr.rel (0) target = $region33
    $region32: #{tpu_custom_call.1} parent=1 // pred_region
      _
    $region33: #{tpu_custom_call.1} parent=1 // pred_fallthru
      _
    // Predicated region
    $region34: #{tpu_custom_call.1} parent=1 // pred_check
      _
    $region35: #{tpu_custom_call.1} parent=1 // pred_check_branch
      %44 = sbr.rel (0) target = $region37
    $region36: #{tpu_custom_call.1} parent=1 // pred_region
      _
    $region37: #{tpu_custom_call.1} parent=1 // pred_fallthru
      _
    // Predicated region
    $region38: #{tpu_custom_call.1} parent=1 // pred_check
      _
    $region39: #{tpu_custom_call.1} parent=1 // pred_check_branch
      %46 = sbr.rel (0) target = $region41
    $region40: #{tpu_custom_call.1} parent=1 // pred_region
      %47 = dma.done [#allocation4], 512
    $region41: #{tpu_custom_call.1} parent=1 // pred_fallthru
      _
    %v48 = vlaneseq
    %v49 = vand.u32 %v48, 127
    %vm50 = vcmp.ge.s32.totalorder %v49, 64
    %vm51 = vcmp.lt.s32.totalorder %v49, 96
    %vm52 = vmand %vm50, %vm51
    %v53 = vld [vmem:[%s0] sm:$0xff]
    %v54 = vld [vmem:[%s0 + $0x8] sm:$0xff]
    %v55 = vld [vmem:[%s0 + $0x10] sm:$0xff]
    %v56 = vld [vmem:[%s0 + $0x18] sm:$0xff]
    %v57 = vld [vmem:[%s0 + $0x20] sm:$0xff]
    %v58 = vld [vmem:[%s0 + $0x28] sm:$0xff]
    %v59 = vld [vmem:[%s0 + $0x30] sm:$0xff]
    %v60 = vld [vmem:[%s0 + $0x38] sm:$0xff]
    %v61 = vld [vmem:[%s1] sm:$0xf]
    %v62 = vld [vmem:[%s2] sm:$0xff]
    %v63 = vld [vmem:[%s2 + $0x8] sm:$0xff]
    %v64 = vld [vmem:[%s2 + $0x10] sm:$0xff]
    %v65 = vld [vmem:[%s2 + $0x18] sm:$0xff]
    %v66 = vld [vmem:[%s3] sm:$0x1]
    %v68 = vlaneseq
    %v69 = vshrl.u32 %v68, 7
    %v70 = vsub.s32 0, %v69
    %v71 = vrot.slane %v66, %v70
    %vm73 = vcmask 31744
    %v75 = vsel %vm73, %v53, 0
    %v78 = vsel %vm73, %v54, 0
    %v81 = vsel %vm73, %v55, 0
    %v84 = vsel %vm73, %v56, 0
    %v87 = vsel %vm73, %v57, 0
    %v90 = vsel %vm73, %v58, 0
    %v93 = vsel %vm73, %v59, 0
    %v96 = vsel %vm73, %v60, 0
    %vm98 = vcmask 1043456
    %v100 = vsel %vm98, %v61, 0
    %102 = vmatprep.subr.mxu0 0.0
    %103 = vmatpush1.msra.mxu0 %v100
    %104 = vmatprep.subr.mxu0 0.0
    %105 = vmatpush1.msra.mxu0 0.0
    %106 = vmatprep.subr.mxu0 0.0
    %107 = vmatpush1.msra.mxu0 0.0
    %108 = vmatprep.subr.mxu0 0.0
    %109 = vmatpush1.msra.mxu0 0.0
    %110 = vmatprep.subr.mxu0 0.0
    %111 = vmatpush1.msra.mxu0 0.0
    %112 = vmatprep.subr.mxu0 0.0
    %113 = vmatpush1.msra.mxu0 0.0
    %114 = vmatprep.subr.mxu0 0.0
    %115 = vmatpush1.msra.mxu0 0.0
    %116 = vmatprep.subr.mxu0 0.0
    %117 = vmatpush1.msra.mxu0 0.0
    %118 = vmatprep.subr.mxu0 0.0
    %119 = vmatpush1.msra.mxu0 0.0
    %120 = vmatprep.subr.mxu0 0.0
    %121 = vmatpush1.msra.mxu0 0.0
    %122 = vmatprep.subr.mxu0 0.0
    %123 = vmatpush1.msra.mxu0 0.0
    %124 = vmatprep.subr.mxu0 0.0
    %125 = vmatpush1.msra.mxu0 0.0
    %126 = vmatprep.subr.mxu0 0.0
    %127 = vmatpush1.msra.mxu0 0.0
    %128 = vmatprep.subr.mxu0 0.0
    %129 = vmatpush1.msra.mxu0 0.0
    %130 = vmatprep.subr.mxu0 0.0
    %131 = vmatpush1.msra.mxu0 0.0
    %132 = vmatprep.subr.mxu0 0.0
    %133 = vmatpush1.msra.mxu0 0.0
    %134 = vmatprep.subr.mxu0 0.0
    %135 = vmatpush1.msra.mxu0 0.0
    %136 = vmatprep.subr.mxu0 0.0
    %137 = vmatpush1.msra.mxu0 0.0
    %138 = vmatprep.subr.mxu0 0.0
    %139 = vmatpush1.msra.mxu0 0.0
    %140 = vmatprep.subr.mxu0 0.0
    %141 = vmatpush1.msra.mxu0 0.0
    %142 = vmatprep.subr.mxu0 0.0
    %143 = vmatpush1.msra.mxu0 0.0
    %144 = vmatprep.subr.mxu0 0.0
    %145 = vmatpush1.msra.mxu0 0.0
    %146 = vmatprep.subr.mxu0 0.0
    %147 = vmatpush1.msra.mxu0 0.0
    %148 = vmatprep.subr.mxu0 0.0
    %149 = vmatpush1.msra.mxu0 0.0
    %150 = vmatprep.subr.mxu0 0.0
    %151 = vmatpush1.msra.mxu0 0.0
    %152 = vmatprep.subr.mxu0 0.0
    %153 = vmatpush1.msra.mxu0 0.0
    %154 = vmatprep.subr.mxu0 0.0
    %155 = vmatpush1.msra.mxu0 0.0
    %156 = vmatprep.subr.mxu0 0.0
    %157 = vmatpush1.msra.mxu0 0.0
    %158 = vmatprep.subr.mxu0 0.0
    %159 = vmatpush1.msra.mxu0 0.0
    %160 = vmatprep.subr.mxu0 0.0
    %161 = vmatpush1.msra.mxu0 0.0
    %162 = vmatprep.subr.mxu0 0.0
    %163 = vmatpush1.msra.mxu0 0.0
    %164 = vmatprep.subr.mxu0 0.0
    %165 = vmatpush1.msra.mxu0 0.0
    %166 = vmatprep.mubr.f32.mxu0 0.0
    %167 = vmatmul.mubr.f32.gmra.mrb[0].mxu0 %v75
    %v168 = vpop.f32.mrb[0].mxu0
    %v169 = vadd.f32 %v71, %v168
    %v170 = vpop.f32.mrb[0].mxu0
    %171 = vmatprep.mubr.f32.mxu0 0.0
    %172 = vmatmul.mubr.f32.gmra.mrb[0].mxu0 %v78
    %v173 = vpop.f32.mrb[0].mxu0
    %v174 = vadd.f32 %v71, %v173
    %v175 = vpop.f32.mrb[0].mxu0
    %176 = vmatprep.mubr.f32.mxu0 0.0
    %177 = vmatmul.mubr.f32.gmra.mrb[0].mxu0 %v81
    %v178 = vpop.f32.mrb[0].mxu0
    %v179 = vadd.f32 %v71, %v178
    %v180 = vpop.f32.mrb[0].mxu0
    %181 = vmatprep.mubr.f32.mxu0 0.0
    %182 = vmatmul.mubr.f32.gmra.mrb[0].mxu0 %v84
    %v183 = vpop.f32.mrb[0].mxu0
    %v184 = vadd.f32 %v71, %v183
    %v185 = vpop.f32.mrb[0].mxu0
    %186 = vmatprep.mubr.f32.mxu0 0.0
    %187 = vmatmul.mubr.f32.gmra.mrb[0].mxu0 %v87
    %v188 = vpop.f32.mrb[0].mxu0
    %v189 = vadd.f32 %v71, %v188
    %v190 = vpop.f32.mrb[0].mxu0
    %191 = vmatprep.mubr.f32.mxu0 0.0
    %192 = vmatmul.mubr.f32.gmra.mrb[0].mxu0 %v90
    %v193 = vpop.f32.mrb[0].mxu0
    %v194 = vadd.f32 %v71, %v193
    %v195 = vpop.f32.mrb[0].mxu0
    %196 = vmatprep.mubr.f32.mxu0 0.0
    %197 = vmatmul.mubr.f32.gmra.mrb[0].mxu0 %v93
    %v198 = vpop.f32.mrb[0].mxu0
    %v199 = vadd.f32 %v71, %v198
    %v200 = vpop.f32.mrb[0].mxu0
    %201 = vmatprep.mubr.f32.mxu0 0.0
    %202 = vmatmul.mubr.f32.gmra.mrb[0].mxu0 %v96
    %v203 = vpop.f32.mrb[0].mxu0
    %v204 = vadd.f32 %v71, %v203
    %v205 = vpop.f32.mrb[0].mxu0
    %206 = vdwg.mxu0
    %vm207 = vcmask 261120
    %v209 = vsel %vm207, 0.0, 0
    %211 = vmatprep.subr.mxu0 0.0
    %212 = vmatpush1.msra.mxu0 %v62
    %213 = vmatprep.subr.mxu0 0.0
    %214 = vmatpush1.msra.mxu0 %v63
    %215 = vmatprep.subr.mxu0 0.0
    %216 = vmatpush1.msra.mxu0 %v64
    %217 = vmatprep.subr.mxu0 0.0
    %218 = vmatpush1.msra.mxu0 %v65
    %219 = vmatprep.subr.mxu0 0.0
    %220 = vmatpush1.msra.mxu0 0.0
    %221 = vmatprep.subr.mxu0 0.0
    %222 = vmatpush1.msra.mxu0 0.0
    %223 = vmatprep.subr.mxu0 0.0
    %224 = vmatpush1.msra.mxu0 0.0
    %225 = vmatprep.subr.mxu0 0.0
    %226 = vmatpush1.msra.mxu0 0.0
    %227 = vmatprep.subr.mxu0 0.0
    %228 = vmatpush1.msra.mxu0 0.0
    %229 = vmatprep.subr.mxu0 0.0
    %230 = vmatpush1.msra.mxu0 0.0
    %231 = vmatprep.subr.mxu0 0.0
    %232 = vmatpush1.msra.mxu0 0.0
    %233 = vmatprep.subr.mxu0 0.0
    %234 = vmatpush1.msra.mxu0 0.0
    %235 = vmatprep.subr.mxu0 0.0
    %236 = vmatpush1.msra.mxu0 0.0
    %237 = vmatprep.subr.mxu0 0.0
    %238 = vmatpush1.msra.mxu0 0.0
    %239 = vmatprep.subr.mxu0 0.0
    %240 = vmatpush1.msra.mxu0 0.0
    %241 = vmatprep.subr.mxu0 0.0
    %242 = vmatpush1.msra.mxu0 0.0
    %243 = vmatprep.subr.mxu0 0.0
    %244 = vmatpush1.msra.mxu0 0.0
    %245 = vmatprep.subr.mxu0 0.0
    %246 = vmatpush1.msra.mxu0 0.0
    %247 = vmatprep.subr.mxu0 0.0
    %248 = vmatpush1.msra.mxu0 0.0
    %249 = vmatprep.subr.mxu0 0.0
    %250 = vmatpush1.msra.mxu0 0.0
    %251 = vmatprep.subr.mxu0 0.0
    %252 = vmatpush1.msra.mxu0 0.0
    %253 = vmatprep.subr.mxu0 0.0
    %254 = vmatpush1.msra.mxu0 0.0
    %255 = vmatprep.subr.mxu0 0.0
    %256 = vmatpush1.msra.mxu0 0.0
    %257 = vmatprep.subr.mxu0 0.0
    %258 = vmatpush1.msra.mxu0 0.0
    %259 = vmatprep.subr.mxu0 0.0
    %260 = vmatpush1.msra.mxu0 0.0
    %261 = vmatprep.subr.mxu0 0.0
    %262 = vmatpush1.msra.mxu0 0.0
    %263 = vmatprep.subr.mxu0 0.0
    %264 = vmatpush1.msra.mxu0 0.0
    %265 = vmatprep.subr.mxu0 0.0
    %266 = vmatpush1.msra.mxu0 0.0
    %267 = vmatprep.subr.mxu0 0.0
    %268 = vmatpush1.msra.mxu0 0.0
    %269 = vmatprep.subr.mxu0 0.0
    %270 = vmatpush1.msra.mxu0 0.0
    %271 = vmatprep.subr.mxu0 0.0
    %272 = vmatpush1.msra.mxu0 0.0
    %273 = vmatprep.subr.mxu0 0.0
    %274 = vmatpush1.msra.mxu0 0.0
    %275 = vmatprep.mubr.f32.mxu0 0.0
    %276 = vmatmul.mubr.f32.gmra.mrb[0].mxu0 %v209
    %v277 = vpop.f32.mrb[0].mxu0
    %v278 = vadd.f32 0.0, %v277
    %v279 = vpop.f32.mrb[0].mxu0
    %280 = vdwg.mxu0
    %v281 = vadd.f32 %v169, %v278
    %v282 = vxor.u32 %v281, 2147483648
    %v283 = vmul.f32 %v282, 1.442695
    %v284 = vpow.pop %v283
    %v285 = vadd.f32 %v284, 1.0
    %v286 = vrcp.pop %v285
    %v287 = vmul.f32 1.0, %v286
    %v288 = vmul.f32 %v287, 2.0
    %v289 = vsub.f32 %v288, 1.0
    %v290 = vsel %vm52, %v289, %v287
    %v291 = vmul.f32 %v290, 0.0
    %293 = vrot.lane.b32.xlu0 %v290, 64
    %v294 = vpop.permute.xlu0 %293
    %v296 = vmul.f32 %v290, %v294
    %298 = vrot.lane.b32.xlu0 %v296, 32
    %v299 = vpop.permute.xlu0 %298
    %v301 = vadd.f32 %v291, %v299
    %v302 = vtanh.pop %v301
    %304 = vrot.lane.b32.xlu0 %v302, 64
    %v305 = vpop.permute.xlu0 %304
    %v307 = vmul.f32 %v290, %v305
    %309 = vrot.lane.b32.xlu0 %v307, 32
    %v310 = vpop.permute.xlu0 %309
    %v311 = vsel %vm207, %v310, 0
    %313 = vmatprep.subr.mxu0 0.0
    %314 = vmatpush1.msra.mxu0 %v62
    %315 = vmatprep.subr.mxu0 0.0
    %316 = vmatpush1.msra.mxu0 %v63
    %317 = vmatprep.subr.mxu0 0.0
    %318 = vmatpush1.msra.mxu0 %v64
    %319 = vmatprep.subr.mxu0 0.0
    %320 = vmatpush1.msra.mxu0 %v65
    %321 = vmatprep.subr.mxu0 0.0
    %322 = vmatpush1.msra.mxu0 0.0
    %323 = vmatprep.subr.mxu0 0.0
    %324 = vmatpush1.msra.mxu0 0.0
    %325 = vmatprep.subr.mxu0 0.0
    %326 = vmatpush1.msra.mxu0 0.0
    %327 = vmatprep.subr.mxu0 0.0
    %328 = vmatpush1.msra.mxu0 0.0
    %329 = vmatprep.subr.mxu0 0.0
    %330 = vmatpush1.msra.mxu0 0.0
    %331 = vmatprep.subr.mxu0 0.0
    %332 = vmatpush1.msra.mxu0 0.0
    %333 = vmatprep.subr.mxu0 0.0
    %334 = vmatpush1.msra.mxu0 0.0
    %335 = vmatprep.subr.mxu0 0.0
    %336 = vmatpush1.msra.mxu0 0.0
    %337 = vmatprep.subr.mxu0 0.0
    %338 = vmatpush1.msra.mxu0 0.0
    %339 = vmatprep.subr.mxu0 0.0
    %340 = vmatpush1.msra.mxu0 0.0
    %341 = vmatprep.subr.mxu0 0.0
    %342 = vmatpush1.msra.mxu0 0.0
    %343 = vmatprep.subr.mxu0 0.0
    %344 = vmatpush1.msra.mxu0 0.0
    %345 = vmatprep.subr.mxu0 0.0
    %346 = vmatpush1.msra.mxu0 0.0
    %347 = vmatprep.subr.mxu0 0.0
    %348 = vmatpush1.msra.mxu0 0.0
    %349 = vmatprep.subr.mxu0 0.0
    %350 = vmatpush1.msra.mxu0 0.0
    %351 = vmatprep.subr.mxu0 0.0
    %352 = vmatpush1.msra.mxu0 0.0
    %353 = vmatprep.subr.mxu0 0.0
    %354 = vmatpush1.msra.mxu0 0.0
    %355 = vmatprep.subr.mxu0 0.0
    %356 = vmatpush1.msra.mxu0 0.0
    %357 = vmatprep.subr.mxu0 0.0
    %358 = vmatpush1.msra.mxu0 0.0
    %359 = vmatprep.subr.mxu0 0.0
    %360 = vmatpush1.msra.mxu0 0.0
    %361 = vmatprep.subr.mxu0 0.0
    %362 = vmatpush1.msra.mxu0 0.0
    %363 = vmatprep.subr.mxu0 0.0
    %364 = vmatpush1.msra.mxu0 0.0
    %365 = vmatprep.subr.mxu0 0.0
    %366 = vmatpush1.msra.mxu0 0.0
    %367 = vmatprep.subr.mxu0 0.0
    %368 = vmatpush1.msra.mxu0 0.0
    %369 = vmatprep.subr.mxu0 0.0
    %370 = vmatpush1.msra.mxu0 0.0
    %371 = vmatprep.subr.mxu0 0.0
    %372 = vmatpush1.msra.mxu0 0.0
    %373 = vmatprep.subr.mxu0 0.0
    %374 = vmatpush1.msra.mxu0 0.0
    %375 = vmatprep.subr.mxu0 0.0
    %376 = vmatpush1.msra.mxu0 0.0
    %377 = vmatprep.mubr.f32.mxu0 0.0
    %378 = vmatmul.mubr.f32.gmra.mrb[0].mxu0 %v311
    %v379 = vpop.f32.mrb[0].mxu0
    %v380 = vadd.f32 0.0, %v379
    %v381 = vpop.f32.mrb[0].mxu0
    %382 = vdwg.mxu0
    %v383 = vadd.f32 %v174, %v380
    %v384 = vxor.u32 %v383, 2147483648
    %v385 = vmul.f32 %v384, 1.442695
    %v386 = vpow.pop %v385
    %v387 = vadd.f32 %v386, 1.0
    %v388 = vrcp.pop %v387
    %v389 = vmul.f32 1.0, %v388
    %v390 = vmul.f32 %v389, 2.0
    %v391 = vsub.f32 %v390, 1.0
    %v392 = vsel %vm52, %v391, %v389
    %v393 = vmul.f32 %v392, %v301
    %395 = vrot.lane.b32.xlu0 %v392, 64
    %v396 = vpop.permute.xlu0 %395
    %v398 = vmul.f32 %v392, %v396
    %400 = vrot.lane.b32.xlu0 %v398, 32
    %v401 = vpop.permute.xlu0 %400
    %v403 = vadd.f32 %v393, %v401
    %v404 = vtanh.pop %v403
    %406 = vrot.lane.b32.xlu0 %v404, 64
    %v407 = vpop.permute.xlu0 %406
    %v409 = vmul.f32 %v392, %v407
    %411 = vrot.lane.b32.xlu0 %v409, 32
    %v412 = vpop.permute.xlu0 %411
    %v413 = vsel %vm207, %v412, 0
    %415 = vmatprep.subr.mxu0 0.0
    %416 = vmatpush1.msra.mxu0 %v62
    %417 = vmatprep.subr.mxu0 0.0
    %418 = vmatpush1.msra.mxu0 %v63
    %419 = vmatprep.subr.mxu0 0.0
    %420 = vmatpush1.msra.mxu0 %v64
    %421 = vmatprep.subr.mxu0 0.0
    %422 = vmatpush1.msra.mxu0 %v65
    %423 = vmatprep.subr.mxu0 0.0
    %424 = vmatpush1.msra.mxu0 0.0
    %425 = vmatprep.subr.mxu0 0.0
    %426 = vmatpush1.msra.mxu0 0.0
    %427 = vmatprep.subr.mxu0 0.0
    %428 = vmatpush1.msra.mxu0 0.0
    %429 = vmatprep.subr.mxu0 0.0
    %430 = vmatpush1.msra.mxu0 0.0
    %431 = vmatprep.subr.mxu0 0.0
    %432 = vmatpush1.msra.mxu0 0.0
    %433 = vmatprep.subr.mxu0 0.0
    %434 = vmatpush1.msra.mxu0 0.0
    %435 = vmatprep.subr.mxu0 0.0
    %436 = vmatpush1.msra.mxu0 0.0
    %437 = vmatprep.subr.mxu0 0.0
    %438 = vmatpush1.msra.mxu0 0.0
    %439 = vmatprep.subr.mxu0 0.0
    %440 = vmatpush1.msra.mxu0 0.0
    %441 = vmatprep.subr.mxu0 0.0
    %442 = vmatpush1.msra.mxu0 0.0
    %443 = vmatprep.subr.mxu0 0.0
    %444 = vmatpush1.msra.mxu0 0.0
    %445 = vmatprep.subr.mxu0 0.0
    %446 = vmatpush1.msra.mxu0 0.0
    %447 = vmatprep.subr.mxu0 0.0
    %448 = vmatpush1.msra.mxu0 0.0
    %449 = vmatprep.subr.mxu0 0.0
    %450 = vmatpush1.msra.mxu0 0.0
    %451 = vmatprep.subr.mxu0 0.0
    %452 = vmatpush1.msra.mxu0 0.0
    %453 = vmatprep.subr.mxu0 0.0
    %454 = vmatpush1.msra.mxu0 0.0
    %455 = vmatprep.subr.mxu0 0.0
    %456 = vmatpush1.msra.mxu0 0.0
    %457 = vmatprep.subr.mxu0 0.0
    %458 = vmatpush1.msra.mxu0 0.0
    %459 = vmatprep.subr.mxu0 0.0
    %460 = vmatpush1.msra.mxu0 0.0
    %461 = vmatprep.subr.mxu0 0.0
    %462 = vmatpush1.msra.mxu0 0.0
    %463 = vmatprep.subr.mxu0 0.0
    %464 = vmatpush1.msra.mxu0 0.0
    %465 = vmatprep.subr.mxu0 0.0
    %466 = vmatpush1.msra.mxu0 0.0
    %467 = vmatprep.subr.mxu0 0.0
    %468 = vmatpush1.msra.mxu0 0.0
    %469 = vmatprep.subr.mxu0 0.0
    %470 = vmatpush1.msra.mxu0 0.0
    %471 = vmatprep.subr.mxu0 0.0
    %472 = vmatpush1.msra.mxu0 0.0
    %473 = vmatprep.subr.mxu0 0.0
    %474 = vmatpush1.msra.mxu0 0.0
    %475 = vmatprep.subr.mxu0 0.0
    %476 = vmatpush1.msra.mxu0 0.0
    %477 = vmatprep.subr.mxu0 0.0
    %478 = vmatpush1.msra.mxu0 0.0
    %479 = vmatprep.mubr.f32.mxu0 0.0
    %480 = vmatmul.mubr.f32.gmra.mrb[0].mxu0 %v413
    %v481 = vpop.f32.mrb[0].mxu0
    %v482 = vadd.f32 0.0, %v481
    %v483 = vpop.f32.mrb[0].mxu0
    %484 = vdwg.mxu0
    %v485 = vadd.f32 %v179, %v482
    %v486 = vxor.u32 %v485, 2147483648
    %v487 = vmul.f32 %v486, 1.442695
    %v488 = vpow.pop %v487
    %v489 = vadd.f32 %v488, 1.0
    %v490 = vrcp.pop %v489
    %v491 = vmul.f32 1.0, %v490
    %v492 = vmul.f32 %v491, 2.0
    %v493 = vsub.f32 %v492, 1.0
    %v494 = vsel %vm52, %v493, %v491
    %v495 = vmul.f32 %v494, %v403
    %497 = vrot.lane.b32.xlu0 %v494, 64
    %v498 = vpop.permute.xlu0 %497
    %v500 = vmul.f32 %v494, %v498
    %502 = vrot.lane.b32.xlu0 %v500, 32
    %v503 = vpop.permute.xlu0 %502
    %v505 = vadd.f32 %v495, %v503
    %v506 = vtanh.pop %v505
    %508 = vrot.lane.b32.xlu0 %v506, 64
    %v509 = vpop.permute.xlu0 %508
    %v511 = vmul.f32 %v494, %v509
    %513 = vrot.lane.b32.xlu0 %v511, 32
    %v514 = vpop.permute.xlu0 %513
    %v515 = vsel %vm207, %v514, 0
    %517 = vmatprep.subr.mxu0 0.0
    %518 = vmatpush1.msra.mxu0 %v62
    %519 = vmatprep.subr.mxu0 0.0
    %520 = vmatpush1.msra.mxu0 %v63
    %521 = vmatprep.subr.mxu0 0.0
    %522 = vmatpush1.msra.mxu0 %v64
    %523 = vmatprep.subr.mxu0 0.0
    %524 = vmatpush1.msra.mxu0 %v65
    %525 = vmatprep.subr.mxu0 0.0
    %526 = vmatpush1.msra.mxu0 0.0
    %527 = vmatprep.subr.mxu0 0.0
    %528 = vmatpush1.msra.mxu0 0.0
    %529 = vmatprep.subr.mxu0 0.0
    %530 = vmatpush1.msra.mxu0 0.0
    %531 = vmatprep.subr.mxu0 0.0
    %532 = vmatpush1.msra.mxu0 0.0
    %533 = vmatprep.subr.mxu0 0.0
    %534 = vmatpush1.msra.mxu0 0.0
    %535 = vmatprep.subr.mxu0 0.0
    %536 = vmatpush1.msra.mxu0 0.0
    %537 = vmatprep.subr.mxu0 0.0
    %538 = vmatpush1.msra.mxu0 0.0
    %539 = vmatprep.subr.mxu0 0.0
    %540 = vmatpush1.msra.mxu0 0.0
    %541 = vmatprep.subr.mxu0 0.0
    %542 = vmatpush1.msra.mxu0 0.0
    %543 = vmatprep.subr.mxu0 0.0
    %544 = vmatpush1.msra.mxu0 0.0
    %545 = vmatprep.subr.mxu0 0.0
    %546 = vmatpush1.msra.mxu0 0.0
    %547 = vmatprep.subr.mxu0 0.0
    %548 = vmatpush1.msra.mxu0 0.0
    %549 = vmatprep.subr.mxu0 0.0
    %550 = vmatpush1.msra.mxu0 0.0
    %551 = vmatprep.subr.mxu0 0.0
    %552 = vmatpush1.msra.mxu0 0.0
    %553 = vmatprep.subr.mxu0 0.0
    %554 = vmatpush1.msra.mxu0 0.0
    %555 = vmatprep.subr.mxu0 0.0
    %556 = vmatpush1.msra.mxu0 0.0
    %557 = vmatprep.subr.mxu0 0.0
    %558 = vmatpush1.msra.mxu0 0.0
    %559 = vmatprep.subr.mxu0 0.0
    %560 = vmatpush1.msra.mxu0 0.0
    %561 = vmatprep.subr.mxu0 0.0
    %562 = vmatpush1.msra.mxu0 0.0
    %563 = vmatprep.subr.mxu0 0.0
    %564 = vmatpush1.msra.mxu0 0.0
    %565 = vmatprep.subr.mxu0 0.0
    %566 = vmatpush1.msra.mxu0 0.0
    %567 = vmatprep.subr.mxu0 0.0
    %568 = vmatpush1.msra.mxu0 0.0
    %569 = vmatprep.subr.mxu0 0.0
    %570 = vmatpush1.msra.mxu0 0.0
    %571 = vmatprep.subr.mxu0 0.0
    %572 = vmatpush1.msra.mxu0 0.0
    %573 = vmatprep.subr.mxu0 0.0
    %574 = vmatpush1.msra.mxu0 0.0
    %575 = vmatprep.subr.mxu0 0.0
    %576 = vmatpush1.msra.mxu0 0.0
    %577 = vmatprep.subr.mxu0 0.0
    %578 = vmatpush1.msra.mxu0 0.0
    %579 = vmatprep.subr.mxu0 0.0
    %580 = vmatpush1.msra.mxu0 0.0
    %581 = vmatprep.mubr.f32.mxu0 0.0
    %582 = vmatmul.mubr.f32.gmra.mrb[0].mxu0 %v515
    %v583 = vpop.f32.mrb[0].mxu0
    %v584 = vadd.f32 0.0, %v583
    %v585 = vpop.f32.mrb[0].mxu0
    %586 = vdwg.mxu0
    %v587 = vadd.f32 %v184, %v584
    %v588 = vxor.u32 %v587, 2147483648
    %v589 = vmul.f32 %v588, 1.442695
    %v590 = vpow.pop %v589
    %v591 = vadd.f32 %v590, 1.0
    %v592 = vrcp.pop %v591
    %v593 = vmul.f32 1.0, %v592
    %v594 = vmul.f32 %v593, 2.0
    %v595 = vsub.f32 %v594, 1.0
    %v596 = vsel %vm52, %v595, %v593
    %v597 = vmul.f32 %v596, %v505
    %599 = vrot.lane.b32.xlu0 %v596, 64
    %v600 = vpop.permute.xlu0 %599
    %v602 = vmul.f32 %v596, %v600
    %604 = vrot.lane.b32.xlu0 %v602, 32
    %v605 = vpop.permute.xlu0 %604
    %v607 = vadd.f32 %v597, %v605
    %v608 = vtanh.pop %v607
    %610 = vrot.lane.b32.xlu0 %v608, 64
    %v611 = vpop.permute.xlu0 %610
    %v613 = vmul.f32 %v596, %v611
    %615 = vrot.lane.b32.xlu0 %v613, 32
    %v616 = vpop.permute.xlu0 %615
    %v617 = vsel %vm207, %v616, 0
    %619 = vmatprep.subr.mxu0 0.0
    %620 = vmatpush1.msra.mxu0 %v62
    %621 = vmatprep.subr.mxu0 0.0
    %622 = vmatpush1.msra.mxu0 %v63
    %623 = vmatprep.subr.mxu0 0.0
    %624 = vmatpush1.msra.mxu0 %v64
    %625 = vmatprep.subr.mxu0 0.0
    %626 = vmatpush1.msra.mxu0 %v65
    %627 = vmatprep.subr.mxu0 0.0
    %628 = vmatpush1.msra.mxu0 0.0
    %629 = vmatprep.subr.mxu0 0.0
    %630 = vmatpush1.msra.mxu0 0.0
    %631 = vmatprep.subr.mxu0 0.0
    %632 = vmatpush1.msra.mxu0 0.0
    %633 = vmatprep.subr.mxu0 0.0
    %634 = vmatpush1.msra.mxu0 0.0
    %635 = vmatprep.subr.mxu0 0.0
    %636 = vmatpush1.msra.mxu0 0.0
    %637 = vmatprep.subr.mxu0 0.0
    %638 = vmatpush1.msra.mxu0 0.0
    %639 = vmatprep.subr.mxu0 0.0
    %640 = vmatpush1.msra.mxu0 0.0
    %641 = vmatprep.subr.mxu0 0.0
    %642 = vmatpush1.msra.mxu0 0.0
    %643 = vmatprep.subr.mxu0 0.0
    %644 = vmatpush1.msra.mxu0 0.0
    %645 = vmatprep.subr.mxu0 0.0
    %646 = vmatpush1.msra.mxu0 0.0
    %647 = vmatprep.subr.mxu0 0.0
    %648 = vmatpush1.msra.mxu0 0.0
    %649 = vmatprep.subr.mxu0 0.0
    %650 = vmatpush1.msra.mxu0 0.0
    %651 = vmatprep.subr.mxu0 0.0
    %652 = vmatpush1.msra.mxu0 0.0
    %653 = vmatprep.subr.mxu0 0.0
    %654 = vmatpush1.msra.mxu0 0.0
    %655 = vmatprep.subr.mxu0 0.0
    %656 = vmatpush1.msra.mxu0 0.0
    %657 = vmatprep.subr.mxu0 0.0
    %658 = vmatpush1.msra.mxu0 0.0
    %659 = vmatprep.subr.mxu0 0.0
    %660 = vmatpush1.msra.mxu0 0.0
    %661 = vmatprep.subr.mxu0 0.0
    %662 = vmatpush1.msra.mxu0 0.0
    %663 = vmatprep.subr.mxu0 0.0
    %664 = vmatpush1.msra.mxu0 0.0
    %665 = vmatprep.subr.mxu0 0.0
    %666 = vmatpush1.msra.mxu0 0.0
    %667 = vmatprep.subr.mxu0 0.0
    %668 = vmatpush1.msra.mxu0 0.0
    %669 = vmatprep.subr.mxu0 0.0
    %670 = vmatpush1.msra.mxu0 0.0
    %671 = vmatprep.subr.mxu0 0.0
    %672 = vmatpush1.msra.mxu0 0.0
    %673 = vmatprep.subr.mxu0 0.0
    %674 = vmatpush1.msra.mxu0 0.0
    %675 = vmatprep.subr.mxu0 0.0
    %676 = vmatpush1.msra.mxu0 0.0
    %677 = vmatprep.subr.mxu0 0.0
    %678 = vmatpush1.msra.mxu0 0.0
    %679 = vmatprep.subr.mxu0 0.0
    %680 = vmatpush1.msra.mxu0 0.0
    %681 = vmatprep.subr.mxu0 0.0
    %682 = vmatpush1.msra.mxu0 0.0
    %683 = vmatprep.mubr.f32.mxu0 0.0
    %684 = vmatmul.mubr.f32.gmra.mrb[0].mxu0 %v617
    %v685 = vpop.f32.mrb[0].mxu0
    %v686 = vadd.f32 0.0, %v685
    %v687 = vpop.f32.mrb[0].mxu0
    %688 = vdwg.mxu0
    %v689 = vadd.f32 %v189, %v686
    %v690 = vxor.u32 %v689, 2147483648
    %v691 = vmul.f32 %v690, 1.442695
    %v692 = vpow.pop %v691
    %v693 = vadd.f32 %v692, 1.0
    %v694 = vrcp.pop %v693
    %v695 = vmul.f32 1.0, %v694
    %v696 = vmul.f32 %v695, 2.0
    %v697 = vsub.f32 %v696, 1.0
    %v698 = vsel %vm52, %v697, %v695
    %v699 = vmul.f32 %v698, %v607
    %701 = vrot.lane.b32.xlu0 %v698, 64
    %v702 = vpop.permute.xlu0 %701
    %v704 = vmul.f32 %v698, %v702
    %706 = vrot.lane.b32.xlu0 %v704, 32
    %v707 = vpop.permute.xlu0 %706
    %v709 = vadd.f32 %v699, %v707
    %v710 = vtanh.pop %v709
    %712 = vrot.lane.b32.xlu0 %v710, 64
    %v713 = vpop.permute.xlu0 %712
    %v715 = vmul.f32 %v698, %v713
    %717 = vrot.lane.b32.xlu0 %v715, 32
    %v718 = vpop.permute.xlu0 %717
    %v719 = vsel %vm207, %v718, 0
    %721 = vmatprep.subr.mxu0 0.0
    %722 = vmatpush1.msra.mxu0 %v62
    %723 = vmatprep.subr.mxu0 0.0
    %724 = vmatpush1.msra.mxu0 %v63
    %725 = vmatprep.subr.mxu0 0.0
    %726 = vmatpush1.msra.mxu0 %v64
    %727 = vmatprep.subr.mxu0 0.0
    %728 = vmatpush1.msra.mxu0 %v65
    %729 = vmatprep.subr.mxu0 0.0
    %730 = vmatpush1.msra.mxu0 0.0
    %731 = vmatprep.subr.mxu0 0.0
    %732 = vmatpush1.msra.mxu0 0.0
    %733 = vmatprep.subr.mxu0 0.0
    %734 = vmatpush1.msra.mxu0 0.0
    %735 = vmatprep.subr.mxu0 0.0
    %736 = vmatpush1.msra.mxu0 0.0
    %737 = vmatprep.subr.mxu0 0.0
    %738 = vmatpush1.msra.mxu0 0.0
    %739 = vmatprep.subr.mxu0 0.0
    %740 = vmatpush1.msra.mxu0 0.0
    %741 = vmatprep.subr.mxu0 0.0
    %742 = vmatpush1.msra.mxu0 0.0
    %743 = vmatprep.subr.mxu0 0.0
    %744 = vmatpush1.msra.mxu0 0.0
    %745 = vmatprep.subr.mxu0 0.0
    %746 = vmatpush1.msra.mxu0 0.0
    %747 = vmatprep.subr.mxu0 0.0
    %748 = vmatpush1.msra.mxu0 0.0
    %749 = vmatprep.subr.mxu0 0.0
    %750 = vmatpush1.msra.mxu0 0.0
    %751 = vmatprep.subr.mxu0 0.0
    %752 = vmatpush1.msra.mxu0 0.0
    %753 = vmatprep.subr.mxu0 0.0
    %754 = vmatpush1.msra.mxu0 0.0
    %755 = vmatprep.subr.mxu0 0.0
    %756 = vmatpush1.msra.mxu0 0.0
    %757 = vmatprep.subr.mxu0 0.0
    %758 = vmatpush1.msra.mxu0 0.0
    %759 = vmatprep.subr.mxu0 0.0
    %760 = vmatpush1.msra.mxu0 0.0
    %761 = vmatprep.subr.mxu0 0.0
    %762 = vmatpush1.msra.mxu0 0.0
    %763 = vmatprep.subr.mxu0 0.0
    %764 = vmatpush1.msra.mxu0 0.0
    %765 = vmatprep.subr.mxu0 0.0
    %766 = vmatpush1.msra.mxu0 0.0
    %767 = vmatprep.subr.mxu0 0.0
    %768 = vmatpush1.msra.mxu0 0.0
    %769 = vmatprep.subr.mxu0 0.0
    %770 = vmatpush1.msra.mxu0 0.0
    %771 = vmatprep.subr.mxu0 0.0
    %772 = vmatpush1.msra.mxu0 0.0
    %773 = vmatprep.subr.mxu0 0.0
    %774 = vmatpush1.msra.mxu0 0.0
    %775 = vmatprep.subr.mxu0 0.0
    %776 = vmatpush1.msra.mxu0 0.0
    %777 = vmatprep.subr.mxu0 0.0
    %778 = vmatpush1.msra.mxu0 0.0
    %779 = vmatprep.subr.mxu0 0.0
    %780 = vmatpush1.msra.mxu0 0.0
    %781 = vmatprep.subr.mxu0 0.0
    %782 = vmatpush1.msra.mxu0 0.0
    %783 = vmatprep.subr.mxu0 0.0
    %784 = vmatpush1.msra.mxu0 0.0
    %785 = vmatprep.mubr.f32.mxu0 0.0
    %786 = vmatmul.mubr.f32.gmra.mrb[0].mxu0 %v719
    %v787 = vpop.f32.mrb[0].mxu0
    %v788 = vadd.f32 0.0, %v787
    %v789 = vpop.f32.mrb[0].mxu0
    %790 = vdwg.mxu0
    %v791 = vadd.f32 %v194, %v788
    %v792 = vxor.u32 %v791, 2147483648
    %v793 = vmul.f32 %v792, 1.442695
    %v794 = vpow.pop %v793
    %v795 = vadd.f32 %v794, 1.0
    %v796 = vrcp.pop %v795
    %v797 = vmul.f32 1.0, %v796
    %v798 = vmul.f32 %v797, 2.0
    %v799 = vsub.f32 %v798, 1.0
    %v800 = vsel %vm52, %v799, %v797
    %v801 = vmul.f32 %v800, %v709
    %803 = vrot.lane.b32.xlu0 %v800, 64
    %v804 = vpop.permute.xlu0 %803
    %v806 = vmul.f32 %v800, %v804
    %808 = vrot.lane.b32.xlu0 %v806, 32
    %v809 = vpop.permute.xlu0 %808
    %v811 = vadd.f32 %v801, %v809
    %v812 = vtanh.pop %v811
    %814 = vrot.lane.b32.xlu0 %v812, 64
    %v815 = vpop.permute.xlu0 %814
    %v817 = vmul.f32 %v800, %v815
    %819 = vrot.lane.b32.xlu0 %v817, 32
    %v820 = vpop.permute.xlu0 %819
    %v821 = vsel %vm207, %v820, 0
    %823 = vmatprep.subr.mxu0 0.0
    %824 = vmatpush1.msra.mxu0 %v62
    %825 = vmatprep.subr.mxu0 0.0
    %826 = vmatpush1.msra.mxu0 %v63
    %827 = vmatprep.subr.mxu0 0.0
    %828 = vmatpush1.msra.mxu0 %v64
    %829 = vmatprep.subr.mxu0 0.0
    %830 = vmatpush1.msra.mxu0 %v65
    %831 = vmatprep.subr.mxu0 0.0
    %832 = vmatpush1.msra.mxu0 0.0
    %833 = vmatprep.subr.mxu0 0.0
    %834 = vmatpush1.msra.mxu0 0.0
    %835 = vmatprep.subr.mxu0 0.0
    %836 = vmatpush1.msra.mxu0 0.0
    %837 = vmatprep.subr.mxu0 0.0
    %838 = vmatpush1.msra.mxu0 0.0
    %839 = vmatprep.subr.mxu0 0.0
    %840 = vmatpush1.msra.mxu0 0.0
    %841 = vmatprep.subr.mxu0 0.0
    %842 = vmatpush1.msra.mxu0 0.0
    %843 = vmatprep.subr.mxu0 0.0
    %844 = vmatpush1.msra.mxu0 0.0
    %845 = vmatprep.subr.mxu0 0.0
    %846 = vmatpush1.msra.mxu0 0.0
    %847 = vmatprep.subr.mxu0 0.0
    %848 = vmatpush1.msra.mxu0 0.0
    %849 = vmatprep.subr.mxu0 0.0
    %850 = vmatpush1.msra.mxu0 0.0
    %851 = vmatprep.subr.mxu0 0.0
    %852 = vmatpush1.msra.mxu0 0.0
    %853 = vmatprep.subr.mxu0 0.0
    %854 = vmatpush1.msra.mxu0 0.0
    %855 = vmatprep.subr.mxu0 0.0
    %856 = vmatpush1.msra.mxu0 0.0
    %857 = vmatprep.subr.mxu0 0.0
    %858 = vmatpush1.msra.mxu0 0.0
    %859 = vmatprep.subr.mxu0 0.0
    %860 = vmatpush1.msra.mxu0 0.0
    %861 = vmatprep.subr.mxu0 0.0
    %862 = vmatpush1.msra.mxu0 0.0
    %863 = vmatprep.subr.mxu0 0.0
    %864 = vmatpush1.msra.mxu0 0.0
    %865 = vmatprep.subr.mxu0 0.0
    %866 = vmatpush1.msra.mxu0 0.0
    %867 = vmatprep.subr.mxu0 0.0
    %868 = vmatpush1.msra.mxu0 0.0
    %869 = vmatprep.subr.mxu0 0.0
    %870 = vmatpush1.msra.mxu0 0.0
    %871 = vmatprep.subr.mxu0 0.0
    %872 = vmatpush1.msra.mxu0 0.0
    %873 = vmatprep.subr.mxu0 0.0
    %874 = vmatpush1.msra.mxu0 0.0
    %875 = vmatprep.subr.mxu0 0.0
    %876 = vmatpush1.msra.mxu0 0.0
    %877 = vmatprep.subr.mxu0 0.0
    %878 = vmatpush1.msra.mxu0 0.0
    %879 = vmatprep.subr.mxu0 0.0
    %880 = vmatpush1.msra.mxu0 0.0
    %881 = vmatprep.subr.mxu0 0.0
    %882 = vmatpush1.msra.mxu0 0.0
    %883 = vmatprep.subr.mxu0 0.0
    %884 = vmatpush1.msra.mxu0 0.0
    %885 = vmatprep.subr.mxu0 0.0
    %886 = vmatpush1.msra.mxu0 0.0
    %887 = vmatprep.mubr.f32.mxu0 0.0
    %888 = vmatmul.mubr.f32.gmra.mrb[0].mxu0 %v821
    %v889 = vpop.f32.mrb[0].mxu0
    %v890 = vadd.f32 0.0, %v889
    %v891 = vpop.f32.mrb[0].mxu0
    %892 = vdwg.mxu0
    %v893 = vadd.f32 %v199, %v890
    %v894 = vxor.u32 %v893, 2147483648
    %v895 = vmul.f32 %v894, 1.442695
    %v896 = vpow.pop %v895
    %v897 = vadd.f32 %v896, 1.0
    %v898 = vrcp.pop %v897
    %v899 = vmul.f32 1.0, %v898
    %v900 = vmul.f32 %v899, 2.0
    %v901 = vsub.f32 %v900, 1.0
    %v902 = vsel %vm52, %v901, %v899
    %v903 = vmul.f32 %v902, %v811
    %905 = vrot.lane.b32.xlu0 %v902, 64
    %v906 = vpop.permute.xlu0 %905
    %v908 = vmul.f32 %v902, %v906
    %910 = vrot.lane.b32.xlu0 %v908, 32
    %v911 = vpop.permute.xlu0 %910
    %v913 = vadd.f32 %v903, %v911
    %v914 = vtanh.pop %v913
    %916 = vrot.lane.b32.xlu0 %v914, 64
    %v917 = vpop.permute.xlu0 %916
    %v919 = vmul.f32 %v902, %v917
    %921 = vrot.lane.b32.xlu0 %v919, 32
    %v922 = vpop.permute.xlu0 %921
    %v923 = vsel %vm207, %v922, 0
    %925 = vmatprep.subr.mxu0 0.0
    %926 = vmatpush1.msra.mxu0 %v62
    %927 = vmatprep.subr.mxu0 0.0
    %928 = vmatpush1.msra.mxu0 %v63
    %929 = vmatprep.subr.mxu0 0.0
    %930 = vmatpush1.msra.mxu0 %v64
    %931 = vmatprep.subr.mxu0 0.0
    %932 = vmatpush1.msra.mxu0 %v65
    %933 = vmatprep.subr.mxu0 0.0
    %934 = vmatpush1.msra.mxu0 0.0
    %935 = vmatprep.subr.mxu0 0.0
    %936 = vmatpush1.msra.mxu0 0.0
    %937 = vmatprep.subr.mxu0 0.0
    %938 = vmatpush1.msra.mxu0 0.0
    %939 = vmatprep.subr.mxu0 0.0
    %940 = vmatpush1.msra.mxu0 0.0
    %941 = vmatprep.subr.mxu0 0.0
    %942 = vmatpush1.msra.mxu0 0.0
    %943 = vmatprep.subr.mxu0 0.0
    %944 = vmatpush1.msra.mxu0 0.0
    %945 = vmatprep.subr.mxu0 0.0
    %946 = vmatpush1.msra.mxu0 0.0
    %947 = vmatprep.subr.mxu0 0.0
    %948 = vmatpush1.msra.mxu0 0.0
    %949 = vmatprep.subr.mxu0 0.0
    %950 = vmatpush1.msra.mxu0 0.0
    %951 = vmatprep.subr.mxu0 0.0
    %952 = vmatpush1.msra.mxu0 0.0
    %953 = vmatprep.subr.mxu0 0.0
    %954 = vmatpush1.msra.mxu0 0.0
    %955 = vmatprep.subr.mxu0 0.0
    %956 = vmatpush1.msra.mxu0 0.0
    %957 = vmatprep.subr.mxu0 0.0
    %958 = vmatpush1.msra.mxu0 0.0
    %959 = vmatprep.subr.mxu0 0.0
    %960 = vmatpush1.msra.mxu0 0.0
    %961 = vmatprep.subr.mxu0 0.0
    %962 = vmatpush1.msra.mxu0 0.0
    %963 = vmatprep.subr.mxu0 0.0
    %964 = vmatpush1.msra.mxu0 0.0
    %965 = vmatprep.subr.mxu0 0.0
    %966 = vmatpush1.msra.mxu0 0.0
    %967 = vmatprep.subr.mxu0 0.0
    %968 = vmatpush1.msra.mxu0 0.0
    %969 = vmatprep.subr.mxu0 0.0
    %970 = vmatpush1.msra.mxu0 0.0
    %971 = vmatprep.subr.mxu0 0.0
    %972 = vmatpush1.msra.mxu0 0.0
    %973 = vmatprep.subr.mxu0 0.0
    %974 = vmatpush1.msra.mxu0 0.0
    %975 = vmatprep.subr.mxu0 0.0
    %976 = vmatpush1.msra.mxu0 0.0
    %977 = vmatprep.subr.mxu0 0.0
    %978 = vmatpush1.msra.mxu0 0.0
    %979 = vmatprep.subr.mxu0 0.0
    %980 = vmatpush1.msra.mxu0 0.0
    %981 = vmatprep.subr.mxu0 0.0
    %982 = vmatpush1.msra.mxu0 0.0
    %983 = vmatprep.subr.mxu0 0.0
    %984 = vmatpush1.msra.mxu0 0.0
    %985 = vmatprep.subr.mxu0 0.0
    %986 = vmatpush1.msra.mxu0 0.0
    %987 = vmatprep.subr.mxu0 0.0
    %988 = vmatpush1.msra.mxu0 0.0
    %989 = vmatprep.mubr.f32.mxu0 0.0
    %990 = vmatmul.mubr.f32.gmra.mrb[0].mxu0 %v923
    %v991 = vpop.f32.mrb[0].mxu0
    %v992 = vadd.f32 0.0, %v991
    %v993 = vpop.f32.mrb[0].mxu0
    %994 = vdwg.mxu0
    %v995 = vadd.f32 %v204, %v992
    %v996 = vxor.u32 %v995, 2147483648
    %v997 = vmul.f32 %v996, 1.442695
    %v998 = vpow.pop %v997
    %v999 = vadd.f32 %v998, 1.0
    %v1000 = vrcp.pop %v999
    %v1001 = vmul.f32 1.0, %v1000
    %v1002 = vmul.f32 %v1001, 2.0
    %v1003 = vsub.f32 %v1002, 1.0
    %v1004 = vsel %vm52, %v1003, %v1001
    %v1005 = vmul.f32 %v1004, %v913
    %1007 = vrot.lane.b32.xlu0 %v1004, 64
    %v1008 = vpop.permute.xlu0 %1007
    %v1010 = vmul.f32 %v1004, %v1008
    %1012 = vrot.lane.b32.xlu0 %v1010, 32
    %v1013 = vpop.permute.xlu0 %1012
    %v1015 = vadd.f32 %v1005, %v1013
    %v1016 = vtanh.pop %v1015
    %1018 = vrot.lane.b32.xlu0 %v1016, 64
    %v1019 = vpop.permute.xlu0 %1018
    %v1021 = vmul.f32 %v1004, %v1019
    %v1022 = vld [vmem:[%s4] sm:$0xff]
    %v1023 = vld [vmem:[%s4 + $0x8] sm:$0xff]
    %v1024 = vld [vmem:[%s4 + $0x10] sm:$0xff]
    %v1025 = vld [vmem:[%s4 + $0x18] sm:$0xff]
    %v1026 = vld [vmem:[#allocation3] sm:$0xff]
    %v1027 = vld [vmem:[#allocation3 + $0x8] sm:$0xff]
    %v1028 = vld [vmem:[#allocation3 + $0x10] sm:$0xff]
    %v1029 = vld [vmem:[#allocation3 + $0x18] sm:$0xff]
    %v1030 = vld [vmem:[%s6] sm:$0x1]
    %v1032 = vlaneseq
    %v1033 = vshrl.u32 %v1032, 7
    %v1034 = vsub.s32 0, %v1033
    %v1035 = vrot.slane %v1030, %v1034
    %1038 = vrot.lane.b32.xlu0 %v1021, 32
    %v1039 = vpop.permute.xlu0 %1038
    %v1040 = vsel %vm207, %v1039, 0
    %1042 = vmatprep.subr.mxu0 0.0
    %1043 = vmatpush1.msra.mxu0 %v1022
    %1044 = vmatprep.subr.mxu0 0.0
    %1045 = vmatpush1.msra.mxu0 %v1023
    %1046 = vmatprep.subr.mxu0 0.0
    %1047 = vmatpush1.msra.mxu0 %v1024
    %1048 = vmatprep.subr.mxu0 0.0
    %1049 = vmatpush1.msra.mxu0 %v1025
    %1050 = vmatprep.subr.mxu0 0.0
    %1051 = vmatpush1.msra.mxu0 0.0
    %1052 = vmatprep.subr.mxu0 0.0
    %1053 = vmatpush1.msra.mxu0 0.0
    %1054 = vmatprep.subr.mxu0 0.0
    %1055 = vmatpush1.msra.mxu0 0.0
    %1056 = vmatprep.subr.mxu0 0.0
    %1057 = vmatpush1.msra.mxu0 0.0
    %1058 = vmatprep.subr.mxu0 0.0
    %1059 = vmatpush1.msra.mxu0 0.0
    %1060 = vmatprep.subr.mxu0 0.0
    %1061 = vmatpush1.msra.mxu0 0.0
    %1062 = vmatprep.subr.mxu0 0.0
    %1063 = vmatpush1.msra.mxu0 0.0
    %1064 = vmatprep.subr.mxu0 0.0
    %1065 = vmatpush1.msra.mxu0 0.0
    %1066 = vmatprep.subr.mxu0 0.0
    %1067 = vmatpush1.msra.mxu0 0.0
    %1068 = vmatprep.subr.mxu0 0.0
    %1069 = vmatpush1.msra.mxu0 0.0
    %1070 = vmatprep.subr.mxu0 0.0
    %1071 = vmatpush1.msra.mxu0 0.0
    %1072 = vmatprep.subr.mxu0 0.0
    %1073 = vmatpush1.msra.mxu0 0.0
    %1074 = vmatprep.subr.mxu0 0.0
    %1075 = vmatpush1.msra.mxu0 0.0
    %1076 = vmatprep.subr.mxu0 0.0
    %1077 = vmatpush1.msra.mxu0 0.0
    %1078 = vmatprep.subr.mxu0 0.0
    %1079 = vmatpush1.msra.mxu0 0.0
    %1080 = vmatprep.subr.mxu0 0.0
    %1081 = vmatpush1.msra.mxu0 0.0
    %1082 = vmatprep.subr.mxu0 0.0
    %1083 = vmatpush1.msra.mxu0 0.0
    %1084 = vmatprep.subr.mxu0 0.0
    %1085 = vmatpush1.msra.mxu0 0.0
    %1086 = vmatprep.subr.mxu0 0.0
    %1087 = vmatpush1.msra.mxu0 0.0
    %1088 = vmatprep.subr.mxu0 0.0
    %1089 = vmatpush1.msra.mxu0 0.0
    %1090 = vmatprep.subr.mxu0 0.0
    %1091 = vmatpush1.msra.mxu0 0.0
    %1092 = vmatprep.subr.mxu0 0.0
    %1093 = vmatpush1.msra.mxu0 0.0
    %1094 = vmatprep.subr.mxu0 0.0
    %1095 = vmatpush1.msra.mxu0 0.0
    %1096 = vmatprep.subr.mxu0 0.0
    %1097 = vmatpush1.msra.mxu0 0.0
    %1098 = vmatprep.subr.mxu0 0.0
    %1099 = vmatpush1.msra.mxu0 0.0
    %1100 = vmatprep.subr.mxu0 0.0
    %1101 = vmatpush1.msra.mxu0 0.0
    %1102 = vmatprep.subr.mxu0 0.0
    %1103 = vmatpush1.msra.mxu0 0.0
    %1104 = vmatprep.subr.mxu0 0.0
    %1105 = vmatpush1.msra.mxu0 0.0
    %1106 = vmatprep.mubr.f32.mxu0 0.0
    %1107 = vmatmul.mubr.f32.gmra.mrb[0].mxu0 %v311
    %v1108 = vpop.f32.mrb[0].mxu0
    %v1109 = vadd.f32 %v1035, %v1108
    %v1110 = vpop.f32.mrb[0].mxu0
    %1111 = vmatprep.mubr.f32.mxu0 0.0
    %1112 = vmatmul.mubr.f32.gmra.mrb[0].mxu0 %v413
    %v1113 = vpop.f32.mrb[0].mxu0
    %v1114 = vadd.f32 %v1035, %v1113
    %v1115 = vpop.f32.mrb[0].mxu0
    %1116 = vmatprep.mubr.f32.mxu0 0.0
    %1117 = vmatmul.mubr.f32.gmra.mrb[0].mxu0 %v515
    %v1118 = vpop.f32.mrb[0].mxu0
    %v1119 = vadd.f32 %v1035, %v1118
    %v1120 = vpop.f32.mrb[0].mxu0
    %1121 = vmatprep.mubr.f32.mxu0 0.0
    %1122 = vmatmul.mubr.f32.gmra.mrb[0].mxu0 %v617
    %v1123 = vpop.f32.mrb[0].mxu0
    %v1124 = vadd.f32 %v1035, %v1123
    %v1125 = vpop.f32.mrb[0].mxu0
    %1126 = vmatprep.mubr.f32.mxu0 0.0
    %1127 = vmatmul.mubr.f32.gmra.mrb[0].mxu0 %v719
    %v1128 = vpop.f32.mrb[0].mxu0
    %v1129 = vadd.f32 %v1035, %v1128
    %v1130 = vpop.f32.mrb[0].mxu0
    %1131 = vmatprep.mubr.f32.mxu0 0.0
    %1132 = vmatmul.mubr.f32.gmra.mrb[0].mxu0 %v821
    %v1133 = vpop.f32.mrb[0].mxu0
    %v1134 = vadd.f32 %v1035, %v1133
    %v1135 = vpop.f32.mrb[0].mxu0
    %1136 = vmatprep.mubr.f32.mxu0 0.0
    %1137 = vmatmul.mubr.f32.gmra.mrb[0].mxu0 %v923
    %v1138 = vpop.f32.mrb[0].mxu0
    %v1139 = vadd.f32 %v1035, %v1138
    %v1140 = vpop.f32.mrb[0].mxu0
    %1141 = vmatprep.mubr.f32.mxu0 0.0
    %1142 = vmatmul.mubr.f32.gmra.mrb[0].mxu0 %v1040
    %v1143 = vpop.f32.mrb[0].mxu0
    %v1144 = vadd.f32 %v1035, %v1143
    %v1145 = vpop.f32.mrb[0].mxu0
    %1146 = vdwg.mxu0
    %1147 = vmatprep.subr.mxu0 0.0
    %1148 = vmatpush1.msra.mxu0 %v1026
    %1149 = vmatprep.subr.mxu0 0.0
    %1150 = vmatpush1.msra.mxu0 %v1027
    %1151 = vmatprep.subr.mxu0 0.0
    %1152 = vmatpush1.msra.mxu0 %v1028
    %1153 = vmatprep.subr.mxu0 0.0
    %1154 = vmatpush1.msra.mxu0 %v1029
    %1155 = vmatprep.subr.mxu0 0.0
    %1156 = vmatpush1.msra.mxu0 0.0
    %1157 = vmatprep.subr.mxu0 0.0
    %1158 = vmatpush1.msra.mxu0 0.0
    %1159 = vmatprep.subr.mxu0 0.0
    %1160 = vmatpush1.msra.mxu0 0.0
    %1161 = vmatprep.subr.mxu0 0.0
    %1162 = vmatpush1.msra.mxu0 0.0
    %1163 = vmatprep.subr.mxu0 0.0
    %1164 = vmatpush1.msra.mxu0 0.0
    %1165 = vmatprep.subr.mxu0 0.0
    %1166 = vmatpush1.msra.mxu0 0.0
    %1167 = vmatprep.subr.mxu0 0.0
    %1168 = vmatpush1.msra.mxu0 0.0
    %1169 = vmatprep.subr.mxu0 0.0
    %1170 = vmatpush1.msra.mxu0 0.0
    %1171 = vmatprep.subr.mxu0 0.0
    %1172 = vmatpush1.msra.mxu0 0.0
    %1173 = vmatprep.subr.mxu0 0.0
    %1174 = vmatpush1.msra.mxu0 0.0
    %1175 = vmatprep.subr.mxu0 0.0
    %1176 = vmatpush1.msra.mxu0 0.0
    %1177 = vmatprep.subr.mxu0 0.0
    %1178 = vmatpush1.msra.mxu0 0.0
    %1179 = vmatprep.subr.mxu0 0.0
    %1180 = vmatpush1.msra.mxu0 0.0
    %1181 = vmatprep.subr.mxu0 0.0
    %1182 = vmatpush1.msra.mxu0 0.0
    %1183 = vmatprep.subr.mxu0 0.0
    %1184 = vmatpush1.msra.mxu0 0.0
    %1185 = vmatprep.subr.mxu0 0.0
    %1186 = vmatpush1.msra.mxu0 0.0
    %1187 = vmatprep.subr.mxu0 0.0
    %1188 = vmatpush1.msra.mxu0 0.0
    %1189 = vmatprep.subr.mxu0 0.0
    %1190 = vmatpush1.msra.mxu0 0.0
    %1191 = vmatprep.subr.mxu0 0.0
    %1192 = vmatpush1.msra.mxu0 0.0
    %1193 = vmatprep.subr.mxu0 0.0
    %1194 = vmatpush1.msra.mxu0 0.0
    %1195 = vmatprep.subr.mxu0 0.0
    %1196 = vmatpush1.msra.mxu0 0.0
    %1197 = vmatprep.subr.mxu0 0.0
    %1198 = vmatpush1.msra.mxu0 0.0
    %1199 = vmatprep.subr.mxu0 0.0
    %1200 = vmatpush1.msra.mxu0 0.0
    %1201 = vmatprep.subr.mxu0 0.0
    %1202 = vmatpush1.msra.mxu0 0.0
    %1203 = vmatprep.subr.mxu0 0.0
    %1204 = vmatpush1.msra.mxu0 0.0
    %1205 = vmatprep.subr.mxu0 0.0
    %1206 = vmatpush1.msra.mxu0 0.0
    %1207 = vmatprep.subr.mxu0 0.0
    %1208 = vmatpush1.msra.mxu0 0.0
    %1209 = vmatprep.subr.mxu0 0.0
    %1210 = vmatpush1.msra.mxu0 0.0
    %1211 = vmatprep.mubr.f32.mxu0 0.0
    %1212 = vmatmul.mubr.f32.gmra.mrb[0].mxu0 %v209
    %v1213 = vpop.f32.mrb[0].mxu0
    %v1214 = vadd.f32 0.0, %v1213
    %v1215 = vpop.f32.mrb[0].mxu0
    %1216 = vdwg.mxu0
    %v1217 = vadd.f32 %v1109, %v1214
    %v1218 = vxor.u32 %v1217, 2147483648
    %v1219 = vmul.f32 %v1218, 1.442695
    %v1220 = vpow.pop %v1219
    %v1221 = vadd.f32 %v1220, 1.0
    %v1222 = vrcp.pop %v1221
    %v1223 = vmul.f32 1.0, %v1222
    %v1224 = vmul.f32 %v1223, 2.0
    %v1225 = vsub.f32 %v1224, 1.0
    %v1226 = vsel %vm52, %v1225, %v1223
    %v1227 = vmul.f32 %v1226, 0.0
    %1229 = vrot.lane.b32.xlu0 %v1226, 64
    %v1230 = vpop.permute.xlu0 %1229
    %v1232 = vmul.f32 %v1226, %v1230
    %1234 = vrot.lane.b32.xlu0 %v1232, 32
    %v1235 = vpop.permute.xlu0 %1234
    %v1237 = vadd.f32 %v1227, %v1235
    %v1238 = vtanh.pop %v1237
    %1240 = vrot.lane.b32.xlu0 %v1238, 64
    %v1241 = vpop.permute.xlu0 %1240
    %v1243 = vmul.f32 %v1226, %v1241
    %1245 = vrot.lane.b32.xlu0 %v1243, 32
    %v1246 = vpop.permute.xlu0 %1245
    %v1247 = vsel %vm207, %v1246, 0
    %1249 = vmatprep.subr.mxu0 0.0
    %1250 = vmatpush1.msra.mxu0 %v1026
    %1251 = vmatprep.subr.mxu0 0.0
    %1252 = vmatpush1.msra.mxu0 %v1027
    %1253 = vmatprep.subr.mxu0 0.0
    %1254 = vmatpush1.msra.mxu0 %v1028
    %1255 = vmatprep.subr.mxu0 0.0
    %1256 = vmatpush1.msra.mxu0 %v1029
    %1257 = vmatprep.subr.mxu0 0.0
    %1258 = vmatpush1.msra.mxu0 0.0
    %1259 = vmatprep.subr.mxu0 0.0
    %1260 = vmatpush1.msra.mxu0 0.0
    %1261 = vmatprep.subr.mxu0 0.0
    %1262 = vmatpush1.msra.mxu0 0.0
    %1263 = vmatprep.subr.mxu0 0.0
    %1264 = vmatpush1.msra.mxu0 0.0
    %1265 = vmatprep.subr.mxu0 0.0
    %1266 = vmatpush1.msra.mxu0 0.0
    %1267 = vmatprep.subr.mxu0 0.0
    %1268 = vmatpush1.msra.mxu0 0.0
    %1269 = vmatprep.subr.mxu0 0.0
    %1270 = vmatpush1.msra.mxu0 0.0
    %1271 = vmatprep.subr.mxu0 0.0
    %1272 = vmatpush1.msra.mxu0 0.0
    %1273 = vmatprep.subr.mxu0 0.0
    %1274 = vmatpush1.msra.mxu0 0.0
    %1275 = vmatprep.subr.mxu0 0.0
    %1276 = vmatpush1.msra.mxu0 0.0
    %1277 = vmatprep.subr.mxu0 0.0
    %1278 = vmatpush1.msra.mxu0 0.0
    %1279 = vmatprep.subr.mxu0 0.0
    %1280 = vmatpush1.msra.mxu0 0.0
    %1281 = vmatprep.subr.mxu0 0.0
    %1282 = vmatpush1.msra.mxu0 0.0
    %1283 = vmatprep.subr.mxu0 0.0
    %1284 = vmatpush1.msra.mxu0 0.0
    %1285 = vmatprep.subr.mxu0 0.0
    %1286 = vmatpush1.msra.mxu0 0.0
    %1287 = vmatprep.subr.mxu0 0.0
    %1288 = vmatpush1.msra.mxu0 0.0
    %1289 = vmatprep.subr.mxu0 0.0
    %1290 = vmatpush1.msra.mxu0 0.0
    %1291 = vmatprep.subr.mxu0 0.0
    %1292 = vmatpush1.msra.mxu0 0.0
    %1293 = vmatprep.subr.mxu0 0.0
    %1294 = vmatpush1.msra.mxu0 0.0
    %1295 = vmatprep.subr.mxu0 0.0
    %1296 = vmatpush1.msra.mxu0 0.0
    %1297 = vmatprep.subr.mxu0 0.0
    %1298 = vmatpush1.msra.mxu0 0.0
    %1299 = vmatprep.subr.mxu0 0.0
    %1300 = vmatpush1.msra.mxu0 0.0
    %1301 = vmatprep.subr.mxu0 0.0
    %1302 = vmatpush1.msra.mxu0 0.0
    %1303 = vmatprep.subr.mxu0 0.0
    %1304 = vmatpush1.msra.mxu0 0.0
    %1305 = vmatprep.subr.mxu0 0.0
    %1306 = vmatpush1.msra.mxu0 0.0
    %1307 = vmatprep.subr.mxu0 0.0
    %1308 = vmatpush1.msra.mxu0 0.0
    %1309 = vmatprep.subr.mxu0 0.0
    %1310 = vmatpush1.msra.mxu0 0.0
    %1311 = vmatprep.subr.mxu0 0.0
    %1312 = vmatpush1.msra.mxu0 0.0
    %1313 = vmatprep.mubr.f32.mxu0 0.0
    %1314 = vmatmul.mubr.f32.gmra.mrb[0].mxu0 %v1247
    %v1315 = vpop.f32.mrb[0].mxu0
    %v1316 = vadd.f32 0.0, %v1315
    %v1317 = vpop.f32.mrb[0].mxu0
    %1318 = vdwg.mxu0
    %v1319 = vadd.f32 %v1114, %v1316
    %v1320 = vxor.u32 %v1319, 2147483648
    %v1321 = vmul.f32 %v1320, 1.442695
    %v1322 = vpow.pop %v1321
    %v1323 = vadd.f32 %v1322, 1.0
    %v1324 = vrcp.pop %v1323
    %v1325 = vmul.f32 1.0, %v1324
    %v1326 = vmul.f32 %v1325, 2.0
    %v1327 = vsub.f32 %v1326, 1.0
    %v1328 = vsel %vm52, %v1327, %v1325
    %v1329 = vmul.f32 %v1328, %v1237
    %1331 = vrot.lane.b32.xlu0 %v1328, 64
    %v1332 = vpop.permute.xlu0 %1331
    %v1334 = vmul.f32 %v1328, %v1332
    %1336 = vrot.lane.b32.xlu0 %v1334, 32
    %v1337 = vpop.permute.xlu0 %1336
    %v1339 = vadd.f32 %v1329, %v1337
    %v1340 = vtanh.pop %v1339
    %1342 = vrot.lane.b32.xlu0 %v1340, 64
    %v1343 = vpop.permute.xlu0 %1342
    %v1345 = vmul.f32 %v1328, %v1343
    %1347 = vrot.lane.b32.xlu0 %v1345, 32
    %v1348 = vpop.permute.xlu0 %1347
    %v1349 = vsel %vm207, %v1348, 0
    %1351 = vmatprep.subr.mxu0 0.0
    %1352 = vmatpush1.msra.mxu0 %v1026
    %1353 = vmatprep.subr.mxu0 0.0
    %1354 = vmatpush1.msra.mxu0 %v1027
    %1355 = vmatprep.subr.mxu0 0.0
    %1356 = vmatpush1.msra.mxu0 %v1028
    %1357 = vmatprep.subr.mxu0 0.0
    %1358 = vmatpush1.msra.mxu0 %v1029
    %1359 = vmatprep.subr.mxu0 0.0
    %1360 = vmatpush1.msra.mxu0 0.0
    %1361 = vmatprep.subr.mxu0 0.0
    %1362 = vmatpush1.msra.mxu0 0.0
    %1363 = vmatprep.subr.mxu0 0.0
    %1364 = vmatpush1.msra.mxu0 0.0
    %1365 = vmatprep.subr.mxu0 0.0
    %1366 = vmatpush1.msra.mxu0 0.0
    %1367 = vmatprep.subr.mxu0 0.0
    %1368 = vmatpush1.msra.mxu0 0.0
    %1369 = vmatprep.subr.mxu0 0.0
    %1370 = vmatpush1.msra.mxu0 0.0
    %1371 = vmatprep.subr.mxu0 0.0
    %1372 = vmatpush1.msra.mxu0 0.0
    %1373 = vmatprep.subr.mxu0 0.0
    %1374 = vmatpush1.msra.mxu0 0.0
    %1375 = vmatprep.subr.mxu0 0.0
    %1376 = vmatpush1.msra.mxu0 0.0
    %1377 = vmatprep.subr.mxu0 0.0
    %1378 = vmatpush1.msra.mxu0 0.0
    %1379 = vmatprep.subr.mxu0 0.0
    %1380 = vmatpush1.msra.mxu0 0.0
    %1381 = vmatprep.subr.mxu0 0.0
    %1382 = vmatpush1.msra.mxu0 0.0
    %1383 = vmatprep.subr.mxu0 0.0
    %1384 = vmatpush1.msra.mxu0 0.0
    %1385 = vmatprep.subr.mxu0 0.0
    %1386 = vmatpush1.msra.mxu0 0.0
    %1387 = vmatprep.subr.mxu0 0.0
    %1388 = vmatpush1.msra.mxu0 0.0
    %1389 = vmatprep.subr.mxu0 0.0
    %1390 = vmatpush1.msra.mxu0 0.0
    %1391 = vmatprep.subr.mxu0 0.0
    %1392 = vmatpush1.msra.mxu0 0.0
    %1393 = vmatprep.subr.mxu0 0.0
    %1394 = vmatpush1.msra.mxu0 0.0
    %1395 = vmatprep.subr.mxu0 0.0
    %1396 = vmatpush1.msra.mxu0 0.0
    %1397 = vmatprep.subr.mxu0 0.0
    %1398 = vmatpush1.msra.mxu0 0.0
    %1399 = vmatprep.subr.mxu0 0.0
    %1400 = vmatpush1.msra.mxu0 0.0
    %1401 = vmatprep.subr.mxu0 0.0
    %1402 = vmatpush1.msra.mxu0 0.0
    %1403 = vmatprep.subr.mxu0 0.0
    %1404 = vmatpush1.msra.mxu0 0.0
    %1405 = vmatprep.subr.mxu0 0.0
    %1406 = vmatpush1.msra.mxu0 0.0
    %1407 = vmatprep.subr.mxu0 0.0
    %1408 = vmatpush1.msra.mxu0 0.0
    %1409 = vmatprep.subr.mxu0 0.0
    %1410 = vmatpush1.msra.mxu0 0.0
    %1411 = vmatprep.subr.mxu0 0.0
    %1412 = vmatpush1.msra.mxu0 0.0
    %1413 = vmatprep.subr.mxu0 0.0
    %1414 = vmatpush1.msra.mxu0 0.0
    %1415 = vmatprep.mubr.f32.mxu0 0.0
    %1416 = vmatmul.mubr.f32.gmra.mrb[0].mxu0 %v1349
    %v1417 = vpop.f32.mrb[0].mxu0
    %v1418 = vadd.f32 0.0, %v1417
    %v1419 = vpop.f32.mrb[0].mxu0
    %1420 = vdwg.mxu0
    %v1421 = vadd.f32 %v1119, %v1418
    %v1422 = vxor.u32 %v1421, 2147483648
    %v1423 = vmul.f32 %v1422, 1.442695
    %v1424 = vpow.pop %v1423
    %v1425 = vadd.f32 %v1424, 1.0
    %v1426 = vrcp.pop %v1425
    %v1427 = vmul.f32 1.0, %v1426
    %v1428 = vmul.f32 %v1427, 2.0
    %v1429 = vsub.f32 %v1428, 1.0
    %v1430 = vsel %vm52, %v1429, %v1427
    %v1431 = vmul.f32 %v1430, %v1339
    %1433 = vrot.lane.b32.xlu0 %v1430, 64
    %v1434 = vpop.permute.xlu0 %1433
    %v1436 = vmul.f32 %v1430, %v1434
    %1438 = vrot.lane.b32.xlu0 %v1436, 32
    %v1439 = vpop.permute.xlu0 %1438
    %v1441 = vadd.f32 %v1431, %v1439
    %v1442 = vtanh.pop %v1441
    %1444 = vrot.lane.b32.xlu0 %v1442, 64
    %v1445 = vpop.permute.xlu0 %1444
    %v1447 = vmul.f32 %v1430, %v1445
    %1449 = vrot.lane.b32.xlu0 %v1447, 32
    %v1450 = vpop.permute.xlu0 %1449
    %v1451 = vsel %vm207, %v1450, 0
    %1453 = vmatprep.subr.mxu0 0.0
    %1454 = vmatpush1.msra.mxu0 %v1026
    %1455 = vmatprep.subr.mxu0 0.0
    %1456 = vmatpush1.msra.mxu0 %v1027
    %1457 = vmatprep.subr.mxu0 0.0
    %1458 = vmatpush1.msra.mxu0 %v1028
    %1459 = vmatprep.subr.mxu0 0.0
    %1460 = vmatpush1.msra.mxu0 %v1029
    %1461 = vmatprep.subr.mxu0 0.0
    %1462 = vmatpush1.msra.mxu0 0.0
    %1463 = vmatprep.subr.mxu0 0.0
    %1464 = vmatpush1.msra.mxu0 0.0
    %1465 = vmatprep.subr.mxu0 0.0
    %1466 = vmatpush1.msra.mxu0 0.0
    %1467 = vmatprep.subr.mxu0 0.0
    %1468 = vmatpush1.msra.mxu0 0.0
    %1469 = vmatprep.subr.mxu0 0.0
    %1470 = vmatpush1.msra.mxu0 0.0
    %1471 = vmatprep.subr.mxu0 0.0
    %1472 = vmatpush1.msra.mxu0 0.0
    %1473 = vmatprep.subr.mxu0 0.0
    %1474 = vmatpush1.msra.mxu0 0.0
    %1475 = vmatprep.subr.mxu0 0.0
    %1476 = vmatpush1.msra.mxu0 0.0
    %1477 = vmatprep.subr.mxu0 0.0
    %1478 = vmatpush1.msra.mxu0 0.0
    %1479 = vmatprep.subr.mxu0 0.0
    %1480 = vmatpush1.msra.mxu0 0.0
    %1481 = vmatprep.subr.mxu0 0.0
    %1482 = vmatpush1.msra.mxu0 0.0
    %1483 = vmatprep.subr.mxu0 0.0
    %1484 = vmatpush1.msra.mxu0 0.0
    %1485 = vmatprep.subr.mxu0 0.0
    %1486 = vmatpush1.msra.mxu0 0.0
    %1487 = vmatprep.subr.mxu0 0.0
    %1488 = vmatpush1.msra.mxu0 0.0
    %1489 = vmatprep.subr.mxu0 0.0
    %1490 = vmatpush1.msra.mxu0 0.0
    %1491 = vmatprep.subr.mxu0 0.0
    %1492 = vmatpush1.msra.mxu0 0.0
    %1493 = vmatprep.subr.mxu0 0.0
    %1494 = vmatpush1.msra.mxu0 0.0
    %1495 = vmatprep.subr.mxu0 0.0
    %1496 = vmatpush1.msra.mxu0 0.0
    %1497 = vmatprep.subr.mxu0 0.0
    %1498 = vmatpush1.msra.mxu0 0.0
    %1499 = vmatprep.subr.mxu0 0.0
    %1500 = vmatpush1.msra.mxu0 0.0
    %1501 = vmatprep.subr.mxu0 0.0
    %1502 = vmatpush1.msra.mxu0 0.0
    %1503 = vmatprep.subr.mxu0 0.0
    %1504 = vmatpush1.msra.mxu0 0.0
    %1505 = vmatprep.subr.mxu0 0.0
    %1506 = vmatpush1.msra.mxu0 0.0
    %1507 = vmatprep.subr.mxu0 0.0
    %1508 = vmatpush1.msra.mxu0 0.0
    %1509 = vmatprep.subr.mxu0 0.0
    %1510 = vmatpush1.msra.mxu0 0.0
    %1511 = vmatprep.subr.mxu0 0.0
    %1512 = vmatpush1.msra.mxu0 0.0
    %1513 = vmatprep.subr.mxu0 0.0
    %1514 = vmatpush1.msra.mxu0 0.0
    %1515 = vmatprep.subr.mxu0 0.0
    %1516 = vmatpush1.msra.mxu0 0.0
    %1517 = vmatprep.mubr.f32.mxu0 0.0
    %1518 = vmatmul.mubr.f32.gmra.mrb[0].mxu0 %v1451
    %v1519 = vpop.f32.mrb[0].mxu0
    %v1520 = vadd.f32 0.0, %v1519
    %v1521 = vpop.f32.mrb[0].mxu0
    %1522 = vdwg.mxu0
    %v1523 = vadd.f32 %v1124, %v1520
    %v1524 = vxor.u32 %v1523, 2147483648
    %v1525 = vmul.f32 %v1524, 1.442695
    %v1526 = vpow.pop %v1525
    %v1527 = vadd.f32 %v1526, 1.0
    %v1528 = vrcp.pop %v1527
    %v1529 = vmul.f32 1.0, %v1528
    %v1530 = vmul.f32 %v1529, 2.0
    %v1531 = vsub.f32 %v1530, 1.0
    %v1532 = vsel %vm52, %v1531, %v1529
    %v1533 = vmul.f32 %v1532, %v1441
    %1535 = vrot.lane.b32.xlu0 %v1532, 64
    %v1536 = vpop.permute.xlu0 %1535
    %v1538 = vmul.f32 %v1532, %v1536
    %1540 = vrot.lane.b32.xlu0 %v1538, 32
    %v1541 = vpop.permute.xlu0 %1540
    %v1543 = vadd.f32 %v1533, %v1541
    %v1544 = vtanh.pop %v1543
    %1546 = vrot.lane.b32.xlu0 %v1544, 64
    %v1547 = vpop.permute.xlu0 %1546
    %v1549 = vmul.f32 %v1532, %v1547
    %1551 = vrot.lane.b32.xlu0 %v1549, 32
    %v1552 = vpop.permute.xlu0 %1551
    %v1553 = vsel %vm207, %v1552, 0
    %1555 = vmatprep.subr.mxu0 0.0
    %1556 = vmatpush1.msra.mxu0 %v1026
    %1557 = vmatprep.subr.mxu0 0.0
    %1558 = vmatpush1.msra.mxu0 %v1027
    %1559 = vmatprep.subr.mxu0 0.0
    %1560 = vmatpush1.msra.mxu0 %v1028
    %1561 = vmatprep.subr.mxu0 0.0
    %1562 = vmatpush1.msra.mxu0 %v1029
    %1563 = vmatprep.subr.mxu0 0.0
    %1564 = vmatpush1.msra.mxu0 0.0
    %1565 = vmatprep.subr.mxu0 0.0
    %1566 = vmatpush1.msra.mxu0 0.0
    %1567 = vmatprep.subr.mxu0 0.0
    %1568 = vmatpush1.msra.mxu0 0.0
    %1569 = vmatprep.subr.mxu0 0.0
    %1570 = vmatpush1.msra.mxu0 0.0
    %1571 = vmatprep.subr.mxu0 0.0
    %1572 = vmatpush1.msra.mxu0 0.0
    %1573 = vmatprep.subr.mxu0 0.0
    %1574 = vmatpush1.msra.mxu0 0.0
    %1575 = vmatprep.subr.mxu0 0.0
    %1576 = vmatpush1.msra.mxu0 0.0
    %1577 = vmatprep.subr.mxu0 0.0
    %1578 = vmatpush1.msra.mxu0 0.0
    %1579 = vmatprep.subr.mxu0 0.0
    %1580 = vmatpush1.msra.mxu0 0.0
    %1581 = vmatprep.subr.mxu0 0.0
    %1582 = vmatpush1.msra.mxu0 0.0
    %1583 = vmatprep.subr.mxu0 0.0
    %1584 = vmatpush1.msra.mxu0 0.0
    %1585 = vmatprep.subr.mxu0 0.0
    %1586 = vmatpush1.msra.mxu0 0.0
    %1587 = vmatprep.subr.mxu0 0.0
    %1588 = vmatpush1.msra.mxu0 0.0
    %1589 = vmatprep.subr.mxu0 0.0
    %1590 = vmatpush1.msra.mxu0 0.0
    %1591 = vmatprep.subr.mxu0 0.0
    %1592 = vmatpush1.msra.mxu0 0.0
    %1593 = vmatprep.subr.mxu0 0.0
    %1594 = vmatpush1.msra.mxu0 0.0
    %1595 = vmatprep.subr.mxu0 0.0
    %1596 = vmatpush1.msra.mxu0 0.0
    %1597 = vmatprep.subr.mxu0 0.0
    %1598 = vmatpush1.msra.mxu0 0.0
    %1599 = vmatprep.subr.mxu0 0.0
    %1600 = vmatpush1.msra.mxu0 0.0
    %1601 = vmatprep.subr.mxu0 0.0
    %1602 = vmatpush1.msra.mxu0 0.0
    %1603 = vmatprep.subr.mxu0 0.0
    %1604 = vmatpush1.msra.mxu0 0.0
    %1605 = vmatprep.subr.mxu0 0.0
    %1606 = vmatpush1.msra.mxu0 0.0
    %1607 = vmatprep.subr.mxu0 0.0
    %1608 = vmatpush1.msra.mxu0 0.0
    %1609 = vmatprep.subr.mxu0 0.0
    %1610 = vmatpush1.msra.mxu0 0.0
    %1611 = vmatprep.subr.mxu0 0.0
    %1612 = vmatpush1.msra.mxu0 0.0
    %1613 = vmatprep.subr.mxu0 0.0
    %1614 = vmatpush1.msra.mxu0 0.0
    %1615 = vmatprep.subr.mxu0 0.0
    %1616 = vmatpush1.msra.mxu0 0.0
    %1617 = vmatprep.subr.mxu0 0.0
    %1618 = vmatpush1.msra.mxu0 0.0
    %1619 = vmatprep.mubr.f32.mxu0 0.0
    %1620 = vmatmul.mubr.f32.gmra.mrb[0].mxu0 %v1553
    %v1621 = vpop.f32.mrb[0].mxu0
    %v1622 = vadd.f32 0.0, %v1621
    %v1623 = vpop.f32.mrb[0].mxu0
    %1624 = vdwg.mxu0
    %v1625 = vadd.f32 %v1129, %v1622
    %v1626 = vxor.u32 %v1625, 2147483648
    %v1627 = vmul.f32 %v1626, 1.442695
    %v1628 = vpow.pop %v1627
    %v1629 = vadd.f32 %v1628, 1.0
    %v1630 = vrcp.pop %v1629
    %v1631 = vmul.f32 1.0, %v1630
    %v1632 = vmul.f32 %v1631, 2.0
    %v1633 = vsub.f32 %v1632, 1.0
    %v1634 = vsel %vm52, %v1633, %v1631
    %v1635 = vmul.f32 %v1634, %v1543
    %1637 = vrot.lane.b32.xlu0 %v1634, 64
    %v1638 = vpop.permute.xlu0 %1637
    %v1640 = vmul.f32 %v1634, %v1638
    %1642 = vrot.lane.b32.xlu0 %v1640, 32
    %v1643 = vpop.permute.xlu0 %1642
    %v1645 = vadd.f32 %v1635, %v1643
    %v1646 = vtanh.pop %v1645
    %1648 = vrot.lane.b32.xlu0 %v1646, 64
    %v1649 = vpop.permute.xlu0 %1648
    %v1651 = vmul.f32 %v1634, %v1649
    %1653 = vrot.lane.b32.xlu0 %v1651, 32
    %v1654 = vpop.permute.xlu0 %1653
    %v1655 = vsel %vm207, %v1654, 0
    %1657 = vmatprep.subr.mxu0 0.0
    %1658 = vmatpush1.msra.mxu0 %v1026
    %1659 = vmatprep.subr.mxu0 0.0
    %1660 = vmatpush1.msra.mxu0 %v1027
    %1661 = vmatprep.subr.mxu0 0.0
    %1662 = vmatpush1.msra.mxu0 %v1028
    %1663 = vmatprep.subr.mxu0 0.0
    %1664 = vmatpush1.msra.mxu0 %v1029
    %1665 = vmatprep.subr.mxu0 0.0
    %1666 = vmatpush1.msra.mxu0 0.0
    %1667 = vmatprep.subr.mxu0 0.0
    %1668 = vmatpush1.msra.mxu0 0.0
    %1669 = vmatprep.subr.mxu0 0.0
    %1670 = vmatpush1.msra.mxu0 0.0
    %1671 = vmatprep.subr.mxu0 0.0
    %1672 = vmatpush1.msra.mxu0 0.0
    %1673 = vmatprep.subr.mxu0 0.0
    %1674 = vmatpush1.msra.mxu0 0.0
    %1675 = vmatprep.subr.mxu0 0.0
    %1676 = vmatpush1.msra.mxu0 0.0
    %1677 = vmatprep.subr.mxu0 0.0
    %1678 = vmatpush1.msra.mxu0 0.0
    %1679 = vmatprep.subr.mxu0 0.0
    %1680 = vmatpush1.msra.mxu0 0.0
    %1681 = vmatprep.subr.mxu0 0.0
    %1682 = vmatpush1.msra.mxu0 0.0
    %1683 = vmatprep.subr.mxu0 0.0
    %1684 = vmatpush1.msra.mxu0 0.0
    %1685 = vmatprep.subr.mxu0 0.0
    %1686 = vmatpush1.msra.mxu0 0.0
    %1687 = vmatprep.subr.mxu0 0.0
    %1688 = vmatpush1.msra.mxu0 0.0
    %1689 = vmatprep.subr.mxu0 0.0
    %1690 = vmatpush1.msra.mxu0 0.0
    %1691 = vmatprep.subr.mxu0 0.0
    %1692 = vmatpush1.msra.mxu0 0.0
    %1693 = vmatprep.subr.mxu0 0.0
    %1694 = vmatpush1.msra.mxu0 0.0
    %1695 = vmatprep.subr.mxu0 0.0
    %1696 = vmatpush1.msra.mxu0 0.0
    %1697 = vmatprep.subr.mxu0 0.0
    %1698 = vmatpush1.msra.mxu0 0.0
    %1699 = vmatprep.subr.mxu0 0.0
    %1700 = vmatpush1.msra.mxu0 0.0
    %1701 = vmatprep.subr.mxu0 0.0
    %1702 = vmatpush1.msra.mxu0 0.0
    %1703 = vmatprep.subr.mxu0 0.0
    %1704 = vmatpush1.msra.mxu0 0.0
    %1705 = vmatprep.subr.mxu0 0.0
    %1706 = vmatpush1.msra.mxu0 0.0
    %1707 = vmatprep.subr.mxu0 0.0
    %1708 = vmatpush1.msra.mxu0 0.0
    %1709 = vmatprep.subr.mxu0 0.0
    %1710 = vmatpush1.msra.mxu0 0.0
    %1711 = vmatprep.subr.mxu0 0.0
    %1712 = vmatpush1.msra.mxu0 0.0
    %1713 = vmatprep.subr.mxu0 0.0
    %1714 = vmatpush1.msra.mxu0 0.0
    %1715 = vmatprep.subr.mxu0 0.0
    %1716 = vmatpush1.msra.mxu0 0.0
    %1717 = vmatprep.subr.mxu0 0.0
    %1718 = vmatpush1.msra.mxu0 0.0
    %1719 = vmatprep.subr.mxu0 0.0
    %1720 = vmatpush1.msra.mxu0 0.0
    %1721 = vmatprep.mubr.f32.mxu0 0.0
    %1722 = vmatmul.mubr.f32.gmra.mrb[0].mxu0 %v1655
    %v1723 = vpop.f32.mrb[0].mxu0
    %v1724 = vadd.f32 0.0, %v1723
    %v1725 = vpop.f32.mrb[0].mxu0
    %1726 = vdwg.mxu0
    %v1727 = vadd.f32 %v1134, %v1724
    %v1728 = vxor.u32 %v1727, 2147483648
    %v1729 = vmul.f32 %v1728, 1.442695
    %v1730 = vpow.pop %v1729
    %v1731 = vadd.f32 %v1730, 1.0
    %v1732 = vrcp.pop %v1731
    %v1733 = vmul.f32 1.0, %v1732
    %v1734 = vmul.f32 %v1733, 2.0
    %v1735 = vsub.f32 %v1734, 1.0
    %v1736 = vsel %vm52, %v1735, %v1733
    %v1737 = vmul.f32 %v1736, %v1645
    %1739 = vrot.lane.b32.xlu0 %v1736, 64
    %v1740 = vpop.permute.xlu0 %1739
    %v1742 = vmul.f32 %v1736, %v1740
    %1744 = vrot.lane.b32.xlu0 %v1742, 32
    %v1745 = vpop.permute.xlu0 %1744
    %v1747 = vadd.f32 %v1737, %v1745
    %v1748 = vtanh.pop %v1747
    %1750 = vrot.lane.b32.xlu0 %v1748, 64
    %v1751 = vpop.permute.xlu0 %1750
    %v1753 = vmul.f32 %v1736, %v1751
    %1755 = vrot.lane.b32.xlu0 %v1753, 32
    %v1756 = vpop.permute.xlu0 %1755
    %v1757 = vsel %vm207, %v1756, 0
    %1759 = vmatprep.subr.mxu0 0.0
    %1760 = vmatpush1.msra.mxu0 %v1026
    %1761 = vmatprep.subr.mxu0 0.0
    %1762 = vmatpush1.msra.mxu0 %v1027
    %1763 = vmatprep.subr.mxu0 0.0
    %1764 = vmatpush1.msra.mxu0 %v1028
    %1765 = vmatprep.subr.mxu0 0.0
    %1766 = vmatpush1.msra.mxu0 %v1029
    %1767 = vmatprep.subr.mxu0 0.0
    %1768 = vmatpush1.msra.mxu0 0.0
    %1769 = vmatprep.subr.mxu0 0.0
    %1770 = vmatpush1.msra.mxu0 0.0
    %1771 = vmatprep.subr.mxu0 0.0
    %1772 = vmatpush1.msra.mxu0 0.0
    %1773 = vmatprep.subr.mxu0 0.0
    %1774 = vmatpush1.msra.mxu0 0.0
    %1775 = vmatprep.subr.mxu0 0.0
    %1776 = vmatpush1.msra.mxu0 0.0
    %1777 = vmatprep.subr.mxu0 0.0
    %1778 = vmatpush1.msra.mxu0 0.0
    %1779 = vmatprep.subr.mxu0 0.0
    %1780 = vmatpush1.msra.mxu0 0.0
    %1781 = vmatprep.subr.mxu0 0.0
    %1782 = vmatpush1.msra.mxu0 0.0
    %1783 = vmatprep.subr.mxu0 0.0
    %1784 = vmatpush1.msra.mxu0 0.0
    %1785 = vmatprep.subr.mxu0 0.0
    %1786 = vmatpush1.msra.mxu0 0.0
    %1787 = vmatprep.subr.mxu0 0.0
    %1788 = vmatpush1.msra.mxu0 0.0
    %1789 = vmatprep.subr.mxu0 0.0
    %1790 = vmatpush1.msra.mxu0 0.0
    %1791 = vmatprep.subr.mxu0 0.0
    %1792 = vmatpush1.msra.mxu0 0.0
    %1793 = vmatprep.subr.mxu0 0.0
    %1794 = vmatpush1.msra.mxu0 0.0
    %1795 = vmatprep.subr.mxu0 0.0
    %1796 = vmatpush1.msra.mxu0 0.0
    %1797 = vmatprep.subr.mxu0 0.0
    %1798 = vmatpush1.msra.mxu0 0.0
    %1799 = vmatprep.subr.mxu0 0.0
    %1800 = vmatpush1.msra.mxu0 0.0
    %1801 = vmatprep.subr.mxu0 0.0
    %1802 = vmatpush1.msra.mxu0 0.0
    %1803 = vmatprep.subr.mxu0 0.0
    %1804 = vmatpush1.msra.mxu0 0.0
    %1805 = vmatprep.subr.mxu0 0.0
    %1806 = vmatpush1.msra.mxu0 0.0
    %1807 = vmatprep.subr.mxu0 0.0
    %1808 = vmatpush1.msra.mxu0 0.0
    %1809 = vmatprep.subr.mxu0 0.0
    %1810 = vmatpush1.msra.mxu0 0.0
    %1811 = vmatprep.subr.mxu0 0.0
    %1812 = vmatpush1.msra.mxu0 0.0
    %1813 = vmatprep.subr.mxu0 0.0
    %1814 = vmatpush1.msra.mxu0 0.0
    %1815 = vmatprep.subr.mxu0 0.0
    %1816 = vmatpush1.msra.mxu0 0.0
    %1817 = vmatprep.subr.mxu0 0.0
    %1818 = vmatpush1.msra.mxu0 0.0
    %1819 = vmatprep.subr.mxu0 0.0
    %1820 = vmatpush1.msra.mxu0 0.0
    %1821 = vmatprep.subr.mxu0 0.0
    %1822 = vmatpush1.msra.mxu0 0.0
    %1823 = vmatprep.mubr.f32.mxu0 0.0
    %1824 = vmatmul.mubr.f32.gmra.mrb[0].mxu0 %v1757
    %v1825 = vpop.f32.mrb[0].mxu0
    %v1826 = vadd.f32 0.0, %v1825
    %v1827 = vpop.f32.mrb[0].mxu0
    %1828 = vdwg.mxu0
    %v1829 = vadd.f32 %v1139, %v1826
    %v1830 = vxor.u32 %v1829, 2147483648
    %v1831 = vmul.f32 %v1830, 1.442695
    %v1832 = vpow.pop %v1831
    %v1833 = vadd.f32 %v1832, 1.0
    %v1834 = vrcp.pop %v1833
    %v1835 = vmul.f32 1.0, %v1834
    %v1836 = vmul.f32 %v1835, 2.0
    %v1837 = vsub.f32 %v1836, 1.0
    %v1838 = vsel %vm52, %v1837, %v1835
    %v1839 = vmul.f32 %v1838, %v1747
    %1841 = vrot.lane.b32.xlu0 %v1838, 64
    %v1842 = vpop.permute.xlu0 %1841
    %v1844 = vmul.f32 %v1838, %v1842
    %1846 = vrot.lane.b32.xlu0 %v1844, 32
    %v1847 = vpop.permute.xlu0 %1846
    %v1849 = vadd.f32 %v1839, %v1847
    %v1850 = vtanh.pop %v1849
    %1852 = vrot.lane.b32.xlu0 %v1850, 64
    %v1853 = vpop.permute.xlu0 %1852
    %v1855 = vmul.f32 %v1838, %v1853
    %1857 = vrot.lane.b32.xlu0 %v1855, 32
    %v1858 = vpop.permute.xlu0 %1857
    %v1859 = vsel %vm207, %v1858, 0
    %1861 = vmatprep.subr.mxu0 0.0
    %1862 = vmatpush1.msra.mxu0 %v1026
    %1863 = vmatprep.subr.mxu0 0.0
    %1864 = vmatpush1.msra.mxu0 %v1027
    %1865 = vmatprep.subr.mxu0 0.0
    %1866 = vmatpush1.msra.mxu0 %v1028
    %1867 = vmatprep.subr.mxu0 0.0
    %1868 = vmatpush1.msra.mxu0 %v1029
    %1869 = vmatprep.subr.mxu0 0.0
    %1870 = vmatpush1.msra.mxu0 0.0
    %1871 = vmatprep.subr.mxu0 0.0
    %1872 = vmatpush1.msra.mxu0 0.0
    %1873 = vmatprep.subr.mxu0 0.0
    %1874 = vmatpush1.msra.mxu0 0.0
    %1875 = vmatprep.subr.mxu0 0.0
    %1876 = vmatpush1.msra.mxu0 0.0
    %1877 = vmatprep.subr.mxu0 0.0
    %1878 = vmatpush1.msra.mxu0 0.0
    %1879 = vmatprep.subr.mxu0 0.0
    %1880 = vmatpush1.msra.mxu0 0.0
    %1881 = vmatprep.subr.mxu0 0.0
    %1882 = vmatpush1.msra.mxu0 0.0
    %1883 = vmatprep.subr.mxu0 0.0
    %1884 = vmatpush1.msra.mxu0 0.0
    %1885 = vmatprep.subr.mxu0 0.0
    %1886 = vmatpush1.msra.mxu0 0.0
    %1887 = vmatprep.subr.mxu0 0.0
    %1888 = vmatpush1.msra.mxu0 0.0
    %1889 = vmatprep.subr.mxu0 0.0
    %1890 = vmatpush1.msra.mxu0 0.0
    %1891 = vmatprep.subr.mxu0 0.0
    %1892 = vmatpush1.msra.mxu0 0.0
    %1893 = vmatprep.subr.mxu0 0.0
    %1894 = vmatpush1.msra.mxu0 0.0
    %1895 = vmatprep.subr.mxu0 0.0
    %1896 = vmatpush1.msra.mxu0 0.0
    %1897 = vmatprep.subr.mxu0 0.0
    %1898 = vmatpush1.msra.mxu0 0.0
    %1899 = vmatprep.subr.mxu0 0.0
    %1900 = vmatpush1.msra.mxu0 0.0
    %1901 = vmatprep.subr.mxu0 0.0
    %1902 = vmatpush1.msra.mxu0 0.0
    %1903 = vmatprep.subr.mxu0 0.0
    %1904 = vmatpush1.msra.mxu0 0.0
    %1905 = vmatprep.subr.mxu0 0.0
    %1906 = vmatpush1.msra.mxu0 0.0
    %1907 = vmatprep.subr.mxu0 0.0
    %1908 = vmatpush1.msra.mxu0 0.0
    %1909 = vmatprep.subr.mxu0 0.0
    %1910 = vmatpush1.msra.mxu0 0.0
    %1911 = vmatprep.subr.mxu0 0.0
    %1912 = vmatpush1.msra.mxu0 0.0
    %1913 = vmatprep.subr.mxu0 0.0
    %1914 = vmatpush1.msra.mxu0 0.0
    %1915 = vmatprep.subr.mxu0 0.0
    %1916 = vmatpush1.msra.mxu0 0.0
    %1917 = vmatprep.subr.mxu0 0.0
    %1918 = vmatpush1.msra.mxu0 0.0
    %1919 = vmatprep.subr.mxu0 0.0
    %1920 = vmatpush1.msra.mxu0 0.0
    %1921 = vmatprep.subr.mxu0 0.0
    %1922 = vmatpush1.msra.mxu0 0.0
    %1923 = vmatprep.subr.mxu0 0.0
    %1924 = vmatpush1.msra.mxu0 0.0
    %1925 = vmatprep.mubr.f32.mxu0 0.0
    %1926 = vmatmul.mubr.f32.gmra.mrb[0].mxu0 %v1859
    %v1927 = vpop.f32.mrb[0].mxu0
    %v1928 = vadd.f32 0.0, %v1927
    %v1929 = vpop.f32.mrb[0].mxu0
    %1930 = vdwg.mxu0
    %v1931 = vadd.f32 %v1144, %v1928
    %v1932 = vxor.u32 %v1931, 2147483648
    %v1933 = vmul.f32 %v1932, 1.442695
    %v1934 = vpow.pop %v1933
    %v1935 = vadd.f32 %v1934, 1.0
    %v1936 = vrcp.pop %v1935
    %v1937 = vmul.f32 1.0, %v1936
    %v1938 = vmul.f32 %v1937, 2.0
    %v1939 = vsub.f32 %v1938, 1.0
    %v1940 = vsel %vm52, %v1939, %v1937
    %v1941 = vmul.f32 %v1940, %v1849
    %1943 = vrot.lane.b32.xlu0 %v1940, 64
    %v1944 = vpop.permute.xlu0 %1943
    %v1946 = vmul.f32 %v1940, %v1944
    %1948 = vrot.lane.b32.xlu0 %v1946, 32
    %v1949 = vpop.permute.xlu0 %1948
    %v1951 = vadd.f32 %v1941, %v1949
    %v1952 = vtanh.pop %v1951
    %1954 = vrot.lane.b32.xlu0 %v1952, 64
    %v1955 = vpop.permute.xlu0 %1954
    %v1957 = vmul.f32 %v1940, %v1955
    %v1958 = vld [vmem:[%s7] sm:$0x1]
    %v1960 = vlaneseq
    %v1961 = vshrl.u32 %v1960, 7
    %v1962 = vsub.s32 0, %v1961
    %v1963 = vrot.slane %v1958, %v1962
    %1964 = vrot.lane.b32.xlu0 %v1963, 96
    %v1965 = vpop.permute.xlu0 %1964
    %v1967 = vmul.f32 %v1957, %v1965
    %1969 = vrot.lane.b32.xlu0 %v1967, 32
    %v1970 = vpop.permute.xlu0 %1969
    %v1972 = vsel %vm207, %v1970, 0.0
    %1973 = vadd.xlane.f32.xlu0 %v1972
    %v1974 = vpop.xlane.xlu0 %1973
    %v1975 = vld [vmem:[#allocation2] sm:$0x1]
    %v1977 = vlaneseq
    %v1978 = vshrl.u32 %v1977, 7
    %v1979 = vsub.s32 0, %v1978
    %v1980 = vrot.slane %v1975, %v1979
    %v1982 = vadd.f32 %v1974, %v1980
    %vm1983 = vcmask 7168
    %1984 = vst.msk [vmem:[%s9] sm:$0xff] %vm1983, %v1982
    // Predicated region
    $region42: #{tpu_custom_call.1} parent=1 // pred_check
      _
    $region43: #{tpu_custom_call.1} parent=1 // pred_check_branch
      %1986 = sbr.rel (0) target = $region45
    $region44: #{tpu_custom_call.1} parent=1 // pred_region
      _
    $region45: #{tpu_custom_call.1} parent=1 // pred_fallthru
      _
    // Predicated region
    $region46: #{tpu_custom_call.1} parent=1 // pred_check
      _
    $region47: #{tpu_custom_call.1} parent=1 // pred_check_branch
      %1988 = sbr.rel (0) target = $region49
    $region48: #{tpu_custom_call.1} parent=1 // pred_region
      _
    $region49: #{tpu_custom_call.1} parent=1 // pred_fallthru
      _
    %1989 = vsyncpa [#allocation4], 1

</llo_original>
